<compile_context>
chip_gen: v6e
topology: v6e:2x2x1
jax: 0.10.0
libtpu: 0.0.40
codegen_flags: <defaults>
</compile_context>

<pallas_src>
import functools

import jax
import jax.numpy as jnp
import numpy as np
from jax.experimental import pallas as pl
from jax.experimental.pallas import tpu as pltpu


# ----------------------------------------------------------------------------
# Fused kernel
# ----------------------------------------------------------------------------
def fused_mask_decoder_kernel(
        bias_b_ref,                                   # SMEM (1,)
        x_ref,                                        # (1, C, thw)
        q_ref,                                        # (1, Q, Din)
        qw1_ref, qb1_ref, qw2_ref, qb2_ref, qw3_ref, qb3_ref,   # query MLP
        w1c_ref, b1c_ref,                             # (2Dh, C), (2Dh, 1)
        xw2_ref, xb2_ref, xw3_ref, xb3_ref,           # xray layers 2/3 (ch-first)
        aw2_ref, ab2_ref, aw3_ref, ab3_ref,           # attn layers 2/3 (ch-first,
                                                      #   bias_w already folded)
        xpred_ref,                                    # (1, Q, thw)
        abias_ref,                                    # (1, heads, Q, thw)
        qo_ref):                                      # VMEM scratch (Q, D)
    t = pl.program_id(1)

    # Query MLP once per batch (tile axis is "arbitrary" => sequential).
    @pl.when(t == 0)
    def _():
        q = q_ref[0]                                                   # (Q, Din)
        h = jnp.maximum(
            jnp.dot(q, qw1_ref[...], preferred_element_type=jnp.float32)
            + qb1_ref[...], 0.0)
        h = jnp.maximum(
            jnp.dot(h, qw2_ref[...], preferred_element_type=jnp.float32)
            + qb2_ref[...], 0.0)
        qo_ref[...] = (
            jnp.dot(h, qw3_ref[...], preferred_element_type=jnp.float32)
            + qb3_ref[...])                                            # (Q, D)

    # ---- pixel MLPs, channels-first (rows = channels, lanes = pixels) ------
    xblk = x_ref[0]                                                    # (C, thw)

    # Shared layer 1: [xray_w1^T ; attn_w1^T] @ x  -> (2Dh, thw), one MXU pass.
    h1 = jnp.maximum(
        jnp.dot(w1c_ref[...], xblk, preferred_element_type=jnp.float32)
        + b1c_ref[...], 0.0)

    dh = xw2_ref.shape[0]
    hx = h1[:dh, :]                                                    # (Dh, thw)
    ha = h1[dh:, :]                                                    # (Dh, thw)

    # xray branch
    hx = jnp.maximum(
        jnp.dot(xw2_ref[...], hx, preferred_element_type=jnp.float32)
        + xb2_ref[...], 0.0)
    xr = (jnp.dot(xw3_ref[...], hx, preferred_element_type=jnp.float32)
          + xb3_ref[...])                                              # (D, thw)

    # attn branch (bias_scaling weight folded into aw3/ab3)
    ha = jnp.maximum(
        jnp.dot(aw2_ref[...], ha, preferred_element_type=jnp.float32)
        + ab2_ref[...], 0.0)
    at = (jnp.dot(aw3_ref[...], ha, preferred_element_type=jnp.float32)
          + ab3_ref[...])                                              # (heads*D, thw)

    # ---- einsums with qo (canonical (Q,D) @ (D,thw) matmuls) ---------------
    qo = qo_ref[...]                                                   # (Q, D)
    xpred_ref[0] = jnp.dot(qo, xr, preferred_element_type=jnp.float32)  # (Q, thw)

    bb = bias_b_ref[0]
    heads = abias_ref.shape[1]
    d = qo.shape[1]
    for hidx in range(heads):                     # static unroll; small head count
        abias_ref[0, hidx] = (
            jnp.dot(qo, at[hidx * d:(hidx + 1) * d, :],
                    preferred_element_type=jnp.float32) + bb)          # (Q, thw)


# ----------------------------------------------------------------------------
# Tiling helper
# ----------------------------------------------------------------------------
def _round_up(v, m):
    return ((v + m - 1) // m) * m


def _hw_tiling(hw, cap):
    """Return (padded_hw, tile).  Full-HW tile if it fits, otherwise pad HW to a
    multiple of 128 and use the largest multiple-of-128 divisor <= cap."""
    if hw <= cap:
        return hw, hw
    hwp = _round_up(hw, 128)
    t = (cap // 128) * 128
    while hwp % t != 0:
        t -= 128
    return hwp, t


# ----------------------------------------------------------------------------
# Mask_Decoder forward (glue in plain JAX, hot path in ONE Pallas call)
# ----------------------------------------------------------------------------
def mask_decoder_forward(query, x, params, *, out_dim, head_num, hw_tile_cap=512):
    N, Q, Din = query.shape
    _, C, H, W = x.shape
    HW = H * W
    D = out_dim
    heads = head_num
    Da = heads * D

    HWp, tile = _hw_tiling(HW, hw_tile_cap)
    n_t = HWp // tile

    # NCHW -> (N, C, HW): contiguous reshape, no transpose (pixels stay lanes).
    x3 = x.reshape(N, C, HW)
    if HWp != HW:
        x3 = jnp.pad(x3, ((0, 0), (0, 0), (0, HWp - HW)))

    # --- parameter prep (tiny weights; transposes are free in the wrapper) ---
    qw1, qb1, qw2, qb2, qw3, qb3 = params["query_mlp"]
    xw1, xb1, xw2, xb2, xw3, xb3 = params["xray_mlp"]
    aw1, ab1, aw2, ab2, aw3, ab3 = params["attn_mlp"]
    assert xw1.shape[1] == aw1.shape[1], "xray/attn MLPs must share mlp_dim"
    Dh = xw1.shape[1]

    bw = jnp.asarray(params["bias_w"], jnp.float32)
    # channels-first (rows = output channels), bias as (rows, 1)
    w1c = jnp.concatenate([xw1.T, aw1.T], axis=0)        # (2Dh, C)
    b1c = jnp.concatenate([xb1.reshape(-1, 1), ab1.reshape(-1, 1)], axis=0)
    xw2t, xb2t = xw2.T, xb2.reshape(-1, 1)               # (Dh, Dh), (Dh, 1)
    xw3t, xb3t = xw3.T, xb3.reshape(-1, 1)               # (D, Dh),  (D, 1)
    aw2t, ab2t = aw2.T, ab2.reshape(-1, 1)
    aw3t, ab3t = (aw3 * bw).T, (ab3 * bw).reshape(-1, 1)  # bias_scaling weight folded
    bias_b = jnp.reshape(params["bias_b"], (1,)).astype(jnp.float32)

    def wspec(shape):
        return pl.BlockSpec(shape, lambda n, t: (0, 0))

    flops = int(
        2 * N * HWp * (C * 2 * Dh + 2 * Dh * Dh + Dh * (D + Da))   # pixel MLPs
        + 2 * N * Q * (Din * Dh + Dh * Dh + Dh * D)                # query MLP
        + 2 * N * Q * HWp * (D + Da))                              # einsums
    bytes_accessed = int(4 * (
        N * C * HWp + N * Q * Din
        + 2 * Dh * C + 2 * Dh
        + 2 * (Dh * Dh + Dh) + Dh * D + D + Dh * Da + Da
        + Din * Dh + Dh + Dh * Dh + Dh + Dh * D + D
        + N * Q * HWp + N * heads * Q * HWp))

    xpred, abias = pl.pallas_call(
        fused_mask_decoder_kernel,
        out_shape=(
            jax.ShapeDtypeStruct((N, Q, HWp), jnp.float32),
            jax.ShapeDtypeStruct((N, heads, Q, HWp), jnp.float32),
        ),
        grid_spec=pltpu.PrefetchScalarGridSpec(
            num_scalar_prefetch=0,
            grid=(N, n_t),
            in_specs=[
                pl.BlockSpec(memory_space=pltpu.MemorySpace.SMEM),     # bias_b
                pl.BlockSpec((1, C, tile), lambda n, t: (n, 0, t)),    # x tile
                pl.BlockSpec((1, Q, Din), lambda n, t: (n, 0, 0)),     # query
                wspec((Din, Dh)), wspec((1, Dh)),                      # query MLP
                wspec((Dh, Dh)), wspec((1, Dh)),
                wspec((Dh, D)), wspec((1, D)),
                wspec((2 * Dh, C)), wspec((2 * Dh, 1)),                # layer-1 cat
                wspec((Dh, Dh)), wspec((Dh, 1)),                       # xray L2
                wspec((D, Dh)), wspec((D, 1)),                         # xray L3
                wspec((Dh, Dh)), wspec((Dh, 1)),                       # attn L2
                wspec((Da, Dh)), wspec((Da, 1)),                       # attn L3
            ],
            out_specs=[
                pl.BlockSpec((1, Q, tile), lambda n, t: (n, 0, t)),
                pl.BlockSpec((1, heads, Q, tile), lambda n, t: (n, 0, 0, t)),
            ],
            scratch_shapes=[pltpu.VMEM((Q, D), jnp.float32)],          # qo
        ),
        compiler_params=pltpu.CompilerParams(
            # N axis is the megacore axis; tile axis must stay sequential so
            # the per-batch qo scratch (computed at t==0) is valid.
            dimension_semantics=("parallel", "arbitrary")),
        cost_estimate=pl.CostEstimate(
            flops=flops, transcendentals=0, bytes_accessed=bytes_accessed),
    )(bias_b, x3, query, qw1, qb1, qw2, qb2, qw3, qb3,
      w1c, b1c, xw2t, xb2t, xw3t, xb3t, aw2t, ab2t, aw3t, ab3t)

    # Only free reshapes (and a pad-trim slice if HW was padded) remain.
    xray_pred = xpred[:, :, :HW].reshape(N, Q, H, W)
    attn_bias = abias[:, :, :, :HW].reshape(N, heads, Q, H, W)
    # TODO(synk): the PyTorch forward also builds `patch_x` but never uses it
    # (dead code) -- intentionally not implemented.
    return xray_pred, attn_bias


# ----------------------------------------------------------------------------
# Deterministic parameter init + pure-JAX reference
# ----------------------------------------------------------------------------
def init_mlp_params(key, din, dh, dout):
    ks = jax.random.split(key, 6)
    return (
        jax.random.normal(ks[0], (din, dh), jnp.float32) * 0.05,
        jax.random.normal(ks[1], (1, dh), jnp.float32) * 0.01,
        jax.random.normal(ks[2], (dh, dh), jnp.float32) * 0.05,
        jax.random.normal(ks[3], (1, dh), jnp.float32) * 0.01,
        jax.random.normal(ks[4], (dh, dout), jnp.float32) * 0.05,
        jax.random.normal(ks[5], (1, dout), jnp.float32) * 0.01,
    )


def mlp_ref(x2d, params):
    w1, b1, w2, b2, w3, b3 = params
    h = jnp.maximum(x2d @ w1 + b1, 0.0)
    h = jnp.maximum(h @ w2 + b2, 0.0)
    return h @ w3 + b3


def mask_decoder_ref(query, x, params, *, out_dim, head_num):
    N, Q, Din = query.shape
    _, C, H, W = x.shape
    HW = H * W
    x_pix = jnp.transpose(x.reshape(N, C, HW), (0, 2, 1)).reshape(N * HW, C)
    q_o = mlp_ref(query.reshape(N * Q, Din), params["query_mlp"]).reshape(N, Q, out_dim)
    xray = mlp_ref(x_pix, params["xray_mlp"]).reshape(N, H, W, out_dim)
    xray = jnp.transpose(xray, (0, 3, 1, 2))                          # (N, D, H, W)
    attn = mlp_ref(x_pix, params["attn_mlp"]).reshape(N, H, W, head_num * out_dim)
    attn = jnp.transpose(attn, (0, 3, 1, 2)).reshape(N, head_num, out_dim, H, W)
    xray_pred = jnp.einsum("NQD,NDhw->NQhw", q_o, xray)
    attn_bias = jnp.einsum("NQD,NHDhw->NHQhw", q_o, attn)
    attn_bias = params["bias_w"] * attn_bias + params["bias_b"]
    return xray_pred, attn_bias


# ----------------------------------------------------------------------------
if __name__ == "__main__":
    N, Q = 2, 8
    IN_DIM, MLP_DIM, OUT_DIM, HEADS = 32, 64, 32, 4
    H = W = 8

    key = jax.random.PRNGKey(0)
    k_q, k_x, k_p1, k_p2, k_p3 = jax.random.split(key, 5)

    query = jax.random.normal(k_q, (N, Q, IN_DIM), jnp.float32)
    x = jax.random.normal(k_x, (N, IN_DIM, H, W), jnp.float32)  # NCHW like PyTorch

    params = {
        "query_mlp": init_mlp_params(k_p1, IN_DIM, MLP_DIM, OUT_DIM),
        "xray_mlp": init_mlp_params(k_p2, IN_DIM, MLP_DIM, OUT_DIM),
        "attn_mlp": init_mlp_params(k_p3, IN_DIM, MLP_DIM, OUT_DIM * HEADS),
        "bias_w": jnp.float32(1.37),   # nn.Linear(1, 1) weight
        "bias_b": jnp.float32(-0.21),  # nn.Linear(1, 1) bias
    }

    fwd = jax.jit(functools.partial(mask_decoder_forward,
                                    out_dim=OUT_DIM, head_num=HEADS))
    xray_pred, attn_bias = fwd(query, x, params)
    jax.block_until_ready((xray_pred, attn_bias))

    # sanity check against pure-JAX reference
    ref_xray, ref_bias = mask_decoder_ref(
        query, x, params, out_dim=OUT_DIM, head_num=HEADS)
    np.testing.assert_allclose(np.asarray(xray_pred), np.asarray(ref_xray),
                               rtol=1e-5, atol=1e-5)
    np.testing.assert_allclose(np.asarray(attn_bias), np.asarray(ref_bias),
                               rtol=1e-5, atol=1e-5)

    assert xray_pred.shape == (N, Q, H, W)
    assert attn_bias.shape == (N, HEADS, Q, H, W)
    print("KERNEL_OK")
</pallas_src>

<mosaic_0001>
module attributes {stable_mosaic.version = 11 : i64} {
  func.func @fused_mask_decoder_kernel(%arg0: i32, %arg1: i32, %arg2: memref<1xf32, #tpu.memory_space<smem>>, %arg3: memref<1x32x64xf32, #tpu.memory_space<vmem>>, %arg4: memref<1x8x32xf32, #tpu.memory_space<vmem>>, %arg5: memref<32x64xf32, #tpu.memory_space<vmem>>, %arg6: memref<1x64xf32, #tpu.memory_space<vmem>>, %arg7: memref<64x64xf32, #tpu.memory_space<vmem>>, %arg8: memref<1x64xf32, #tpu.memory_space<vmem>>, %arg9: memref<64x32xf32, #tpu.memory_space<vmem>>, %arg10: memref<1x32xf32, #tpu.memory_space<vmem>>, %arg11: memref<128x32xf32, #tpu.memory_space<vmem>>, %arg12: memref<128x1xf32, #tpu.memory_space<vmem>>, %arg13: memref<64x64xf32, #tpu.memory_space<vmem>>, %arg14: memref<64x1xf32, #tpu.memory_space<vmem>>, %arg15: memref<32x64xf32, #tpu.memory_space<vmem>>, %arg16: memref<32x1xf32, #tpu.memory_space<vmem>>, %arg17: memref<64x64xf32, #tpu.memory_space<vmem>>, %arg18: memref<64x1xf32, #tpu.memory_space<vmem>>, %arg19: memref<128x64xf32, #tpu.memory_space<vmem>>, %arg20: memref<128x1xf32, #tpu.memory_space<vmem>>, %arg21: memref<1x8x64xf32, #tpu.memory_space<vmem>>, %arg22: memref<1x4x8x64xf32, #tpu.memory_space<vmem>>, %arg23: memref<8x32xf32, #tpu.memory_space<vmem>>) attributes {dimension_semantics = [#tpu.dimension_semantics<parallel>, #tpu.dimension_semantics<arbitrary>], iteration_bounds = array<i64: 2, 1>, scalar_prefetch = 0 : i64, scratch_operands = 1 : i64, tpu.core_type = #tpu.core_type<tc>, window_params = [{transform_indices = @transform_0, window_bounds = array<i64: 1>}, {transform_indices = @transform_1, window_bounds = array<i64: 1, 32, 64>}, {transform_indices = @transform_2, window_bounds = array<i64: 1, 8, 32>}, {pipeline_mode = #tpu.pipeline_mode<synchronous>, transform_indices = @transform_3, window_bounds = array<i64: 32, 64>}, {pipeline_mode = #tpu.pipeline_mode<synchronous>, transform_indices = @transform_4, window_bounds = array<i64: 1, 64>}, {pipeline_mode = #tpu.pipeline_mode<synchronous>, transform_indices = @transform_5, window_bounds = array<i64: 64, 64>}, {pipeline_mode = #tpu.pipeline_mode<synchronous>, transform_indices = @transform_6, window_bounds = array<i64: 1, 64>}, {pipeline_mode = #tpu.pipeline_mode<synchronous>, transform_indices = @transform_7, window_bounds = array<i64: 64, 32>}, {pipeline_mode = #tpu.pipeline_mode<synchronous>, transform_indices = @transform_8, window_bounds = array<i64: 1, 32>}, {pipeline_mode = #tpu.pipeline_mode<synchronous>, transform_indices = @transform_9, window_bounds = array<i64: 128, 32>}, {pipeline_mode = #tpu.pipeline_mode<synchronous>, transform_indices = @transform_10, window_bounds = array<i64: 128, 1>}, {pipeline_mode = #tpu.pipeline_mode<synchronous>, transform_indices = @transform_11, window_bounds = array<i64: 64, 64>}, {pipeline_mode = #tpu.pipeline_mode<synchronous>, transform_indices = @transform_12, window_bounds = array<i64: 64, 1>}, {pipeline_mode = #tpu.pipeline_mode<synchronous>, transform_indices = @transform_13, window_bounds = array<i64: 32, 64>}, {pipeline_mode = #tpu.pipeline_mode<synchronous>, transform_indices = @transform_14, window_bounds = array<i64: 32, 1>}, {pipeline_mode = #tpu.pipeline_mode<synchronous>, transform_indices = @transform_15, window_bounds = array<i64: 64, 64>}, {pipeline_mode = #tpu.pipeline_mode<synchronous>, transform_indices = @transform_16, window_bounds = array<i64: 64, 1>}, {pipeline_mode = #tpu.pipeline_mode<synchronous>, transform_indices = @transform_17, window_bounds = array<i64: 128, 64>}, {pipeline_mode = #tpu.pipeline_mode<synchronous>, transform_indices = @transform_18, window_bounds = array<i64: 128, 1>}, {transform_indices = @transform_19, window_bounds = array<i64: 1, 8, 64>}, {transform_indices = @transform_20, window_bounds = array<i64: 1, 4, 8, 64>}]} {
    %c0_i32 = arith.constant 0 : i32
    %0 = arith.cmpi eq, %arg1, %c0_i32 : i32
    %1 = arith.extui %0 : i1 to i32
    %c0_i32_0 = arith.constant 0 : i32
    %2 = arith.cmpi ne, %1, %c0_i32_0 : i32
    scf.if %2 {
      %c0_54 = arith.constant 0 : index
      %c0_55 = arith.constant 0 : index
      %c0_56 = arith.constant 0 : index
      %72 = vector.load %arg4[%c0_54, %c0_55, %c0_56] : memref<1x8x32xf32, #tpu.memory_space<vmem>>, vector<1x8x32xf32>
      %73 = vector.shape_cast %72 : vector<1x8x32xf32> to vector<8x32xf32>
      %c0_57 = arith.constant 0 : index
      %c0_58 = arith.constant 0 : index
      %74 = vector.load %arg5[%c0_57, %c0_58] : memref<32x64xf32, #tpu.memory_space<vmem>>, vector<32x64xf32>
      %cst_59 = arith.constant dense<0.000000e+00> : vector<8x64xf32>
      %75 = tpu.matmul %73, %74, %cst_59 {dimension_numbers = #tpu.dot_dimension_numbers<[1], [0], [0], [1], [0, 0, 1, 1], [], []>} : vector<8x32xf32>, vector<32x64xf32>, vector<8x64xf32> -> vector<8x64xf32>
      %c0_60 = arith.constant 0 : index
      %c0_61 = arith.constant 0 : index
      %76 = vector.load %arg6[%c0_60, %c0_61] : memref<1x64xf32, #tpu.memory_space<vmem>>, vector<1x64xf32>
      %77 = vector.broadcast %76 : vector<1x64xf32> to vector<8x64xf32>
      %78 = arith.addf %75, %77 : vector<8x64xf32>
      %cst_62 = arith.constant 0.000000e+00 : f32
      %79 = vector.broadcast %cst_62 : f32 to vector<8x64xf32>
      %80 = arith.maximumf %78, %79 : vector<8x64xf32>
      %c0_63 = arith.constant 0 : index
      %c0_64 = arith.constant 0 : index
      %81 = vector.load %arg7[%c0_63, %c0_64] : memref<64x64xf32, #tpu.memory_space<vmem>>, vector<64x64xf32>
      %cst_65 = arith.constant dense<0.000000e+00> : vector<8x64xf32>
      %82 = tpu.matmul %80, %81, %cst_65 {dimension_numbers = #tpu.dot_dimension_numbers<[1], [0], [0], [1], [0, 0, 1, 1], [], []>} : vector<8x64xf32>, vector<64x64xf32>, vector<8x64xf32> -> vector<8x64xf32>
      %c0_66 = arith.constant 0 : index
      %c0_67 = arith.constant 0 : index
      %83 = vector.load %arg8[%c0_66, %c0_67] : memref<1x64xf32, #tpu.memory_space<vmem>>, vector<1x64xf32>
      %84 = vector.broadcast %83 : vector<1x64xf32> to vector<8x64xf32>
      %85 = arith.addf %82, %84 : vector<8x64xf32>
      %cst_68 = arith.constant 0.000000e+00 : f32
      %86 = vector.broadcast %cst_68 : f32 to vector<8x64xf32>
      %87 = arith.maximumf %85, %86 : vector<8x64xf32>
      %c0_69 = arith.constant 0 : index
      %c0_70 = arith.constant 0 : index
      %88 = vector.load %arg9[%c0_69, %c0_70] : memref<64x32xf32, #tpu.memory_space<vmem>>, vector<64x32xf32>
      %cst_71 = arith.constant dense<0.000000e+00> : vector<8x32xf32>
      %89 = tpu.matmul %87, %88, %cst_71 {dimension_numbers = #tpu.dot_dimension_numbers<[1], [0], [0], [1], [0, 0, 1, 1], [], []>} : vector<8x64xf32>, vector<64x32xf32>, vector<8x32xf32> -> vector<8x32xf32>
      %c0_72 = arith.constant 0 : index
      %c0_73 = arith.constant 0 : index
      %90 = vector.load %arg10[%c0_72, %c0_73] : memref<1x32xf32, #tpu.memory_space<vmem>>, vector<1x32xf32>
      %91 = vector.broadcast %90 : vector<1x32xf32> to vector<8x32xf32>
      %92 = arith.addf %89, %91 : vector<8x32xf32>
      %c0_74 = arith.constant 0 : index
      %c0_75 = arith.constant 0 : index
      %93 = vector.load %arg23[%c0_74, %c0_75] : memref<8x32xf32, #tpu.memory_space<vmem>>, vector<8x32xf32>
      tpu.vector_store %arg23[%c0_74, %c0_75], %92 {strides = array<i32>} : memref<8x32xf32, #tpu.memory_space<vmem>>, vector<8x32xf32>,
    } else {
    }
    %c0 = arith.constant 0 : index
    %c0_1 = arith.constant 0 : index
    %c0_2 = arith.constant 0 : index
    %3 = vector.load %arg3[%c0, %c0_1, %c0_2] : memref<1x32x64xf32, #tpu.memory_space<vmem>>, vector<1x32x64xf32>
    %4 = vector.shape_cast %3 : vector<1x32x64xf32> to vector<32x64xf32>
    %c0_3 = arith.constant 0 : index
    %c0_4 = arith.constant 0 : index
    %5 = vector.load %arg11[%c0_3, %c0_4] : memref<128x32xf32, #tpu.memory_space<vmem>>, vector<128x32xf32>
    %cst = arith.constant dense<0.000000e+00> : vector<128x64xf32>
    %6 = tpu.matmul %5, %4, %cst {dimension_numbers = #tpu.dot_dimension_numbers<[1], [0], [0], [1], [0, 0, 1, 1], [], []>} : vector<128x32xf32>, vector<32x64xf32>, vector<128x64xf32> -> vector<128x64xf32>
    %c0_5 = arith.constant 0 : index
    %c0_6 = arith.constant 0 : index
    %7 = vector.load %arg12[%c0_5, %c0_6] : memref<128x1xf32, #tpu.memory_space<vmem>>, vector<128x1xf32>
    %8 = vector.broadcast %7 : vector<128x1xf32> to vector<128x64xf32>
    %9 = arith.addf %6, %8 : vector<128x64xf32>
    %cst_7 = arith.constant 0.000000e+00 : f32
    %10 = vector.broadcast %cst_7 : f32 to vector<128x64xf32>
    %11 = arith.maximumf %9, %10 : vector<128x64xf32>
    %12 = vector.extract_strided_slice %11 {offsets = [0, 0], sizes = [64, 64], strides = [1, 1]} : vector<128x64xf32> to vector<64x64xf32>
    %13 = vector.extract_strided_slice %11 {offsets = [64, 0], sizes = [64, 64], strides = [1, 1]} : vector<128x64xf32> to vector<64x64xf32>
    %c0_8 = arith.constant 0 : index
    %c0_9 = arith.constant 0 : index
    %14 = vector.load %arg13[%c0_8, %c0_9] : memref<64x64xf32, #tpu.memory_space<vmem>>, vector<64x64xf32>
    %cst_10 = arith.constant dense<0.000000e+00> : vector<64x64xf32>
    %15 = tpu.matmul %14, %12, %cst_10 {dimension_numbers = #tpu.dot_dimension_numbers<[1], [0], [0], [1], [0, 0, 1, 1], [], []>} : vector<64x64xf32>, vector<64x64xf32>, vector<64x64xf32> -> vector<64x64xf32>
    %c0_11 = arith.constant 0 : index
    %c0_12 = arith.constant 0 : index
    %16 = vector.load %arg14[%c0_11, %c0_12] : memref<64x1xf32, #tpu.memory_space<vmem>>, vector<64x1xf32>
    %17 = vector.broadcast %16 : vector<64x1xf32> to vector<64x64xf32>
    %18 = arith.addf %15, %17 : vector<64x64xf32>
    %cst_13 = arith.constant 0.000000e+00 : f32
    %19 = vector.broadcast %cst_13 : f32 to vector<64x64xf32>
    %20 = arith.maximumf %18, %19 : vector<64x64xf32>
    %c0_14 = arith.constant 0 : index
    %c0_15 = arith.constant 0 : index
    %21 = vector.load %arg15[%c0_14, %c0_15] : memref<32x64xf32, #tpu.memory_space<vmem>>, vector<32x64xf32>
    %cst_16 = arith.constant dense<0.000000e+00> : vector<32x64xf32>
    %22 = tpu.matmul %21, %20, %cst_16 {dimension_numbers = #tpu.dot_dimension_numbers<[1], [0], [0], [1], [0, 0, 1, 1], [], []>} : vector<32x64xf32>, vector<64x64xf32>, vector<32x64xf32> -> vector<32x64xf32>
    %c0_17 = arith.constant 0 : index
    %c0_18 = arith.constant 0 : index
    %23 = vector.load %arg16[%c0_17, %c0_18] : memref<32x1xf32, #tpu.memory_space<vmem>>, vector<32x1xf32>
    %24 = vector.broadcast %23 : vector<32x1xf32> to vector<32x64xf32>
    %25 = arith.addf %22, %24 : vector<32x64xf32>
    %c0_19 = arith.constant 0 : index
    %c0_20 = arith.constant 0 : index
    %26 = vector.load %arg17[%c0_19, %c0_20] : memref<64x64xf32, #tpu.memory_space<vmem>>, vector<64x64xf32>
    %cst_21 = arith.constant dense<0.000000e+00> : vector<64x64xf32>
    %27 = tpu.matmul %26, %13, %cst_21 {dimension_numbers = #tpu.dot_dimension_numbers<[1], [0], [0], [1], [0, 0, 1, 1], [], []>} : vector<64x64xf32>, vector<64x64xf32>, vector<64x64xf32> -> vector<64x64xf32>
    %c0_22 = arith.constant 0 : index
    %c0_23 = arith.constant 0 : index
    %28 = vector.load %arg18[%c0_22, %c0_23] : memref<64x1xf32, #tpu.memory_space<vmem>>, vector<64x1xf32>
    %29 = vector.broadcast %28 : vector<64x1xf32> to vector<64x64xf32>
    %30 = arith.addf %27, %29 : vector<64x64xf32>
    %cst_24 = arith.constant 0.000000e+00 : f32
    %31 = vector.broadcast %cst_24 : f32 to vector<64x64xf32>
    %32 = arith.maximumf %30, %31 : vector<64x64xf32>
    %c0_25 = arith.constant 0 : index
    %c0_26 = arith.constant 0 : index
    %33 = vector.load %arg19[%c0_25, %c0_26] : memref<128x64xf32, #tpu.memory_space<vmem>>, vector<128x64xf32>
    %cst_27 = arith.constant dense<0.000000e+00> : vector<128x64xf32>
    %34 = tpu.matmul %33, %32, %cst_27 {dimension_numbers = #tpu.dot_dimension_numbers<[1], [0], [0], [1], [0, 0, 1, 1], [], []>} : vector<128x64xf32>, vector<64x64xf32>, vector<128x64xf32> -> vector<128x64xf32>
    %c0_28 = arith.constant 0 : index
    %c0_29 = arith.constant 0 : index
    %35 = vector.load %arg20[%c0_28, %c0_29] : memref<128x1xf32, #tpu.memory_space<vmem>>, vector<128x1xf32>
    %36 = vector.broadcast %35 : vector<128x1xf32> to vector<128x64xf32>
    %37 = arith.addf %34, %36 : vector<128x64xf32>
    %c0_30 = arith.constant 0 : index
    %c0_31 = arith.constant 0 : index
    %38 = vector.load %arg23[%c0_30, %c0_31] : memref<8x32xf32, #tpu.memory_space<vmem>>, vector<8x32xf32>
    %cst_32 = arith.constant dense<0.000000e+00> : vector<8x64xf32>
    %39 = tpu.matmul %38, %25, %cst_32 {dimension_numbers = #tpu.dot_dimension_numbers<[1], [0], [0], [1], [0, 0, 1, 1], [], []>} : vector<8x32xf32>, vector<32x64xf32>, vector<8x64xf32> -> vector<8x64xf32>
    %c0_33 = arith.constant 0 : index
    %c0_34 = arith.constant 0 : index
    %c0_35 = arith.constant 0 : index
    %40 = vector.load %arg21[%c0_33, %c0_34, %c0_35] : memref<1x8x64xf32, #tpu.memory_space<vmem>>, vector<1x8x64xf32>
    %41 = vector.shape_cast %40 : vector<1x8x64xf32> to vector<8x64xf32>
    %42 = vector.shape_cast %39 : vector<8x64xf32> to vector<1x8x64xf32>
    tpu.vector_store %arg21[%c0_33, %c0_34, %c0_35], %42 {strides = array<i32>} : memref<1x8x64xf32, #tpu.memory_space<vmem>>, vector<1x8x64xf32>,
    %c0_36 = arith.constant 0 : index
    %43 = memref.load %arg2[%c0_36] : memref<1xf32, #tpu.memory_space<smem>>
    %44 = vector.extract_strided_slice %37 {offsets = [0, 0], sizes = [32, 64], strides = [1, 1]} : vector<128x64xf32> to vector<32x64xf32>
    %cst_37 = arith.constant dense<0.000000e+00> : vector<8x64xf32>
    %45 = tpu.matmul %38, %44, %cst_37 {dimension_numbers = #tpu.dot_dimension_numbers<[1], [0], [0], [1], [0, 0, 1, 1], [], []>} : vector<8x32xf32>, vector<32x64xf32>, vector<8x64xf32> -> vector<8x64xf32>
    %46 = vector.broadcast %43 : f32 to vector<8x64xf32>
    %47 = arith.addf %45, %46 : vector<8x64xf32>
    %c0_38 = arith.constant 0 : index
    %c0_39 = arith.constant 0 : index
    %c0_40 = arith.constant 0 : index
    %c0_41 = arith.constant 0 : index
    %48 = vector.load %arg22[%c0_38, %c0_39, %c0_40, %c0_41] : memref<1x4x8x64xf32, #tpu.memory_space<vmem>>, vector<1x1x8x64xf32>
    %49 = vector.shape_cast %48 : vector<1x1x8x64xf32> to vector<8x64xf32>
    %50 = vector.shape_cast %47 : vector<8x64xf32> to vector<1x1x8x64xf32>
    tpu.vector_store %arg22[%c0_38, %c0_39, %c0_40, %c0_41], %50 {strides = array<i32>} : memref<1x4x8x64xf32, #tpu.memory_space<vmem>>, vector<1x1x8x64xf32>,
    %51 = vector.extract_strided_slice %37 {offsets = [32, 0], sizes = [32, 64], strides = [1, 1]} : vector<128x64xf32> to vector<32x64xf32>
    %cst_42 = arith.constant dense<0.000000e+00> : vector<8x64xf32>
    %52 = tpu.matmul %38, %51, %cst_42 {dimension_numbers = #tpu.dot_dimension_numbers<[1], [0], [0], [1], [0, 0, 1, 1], [], []>} : vector<8x32xf32>, vector<32x64xf32>, vector<8x64xf32> -> vector<8x64xf32>
    %53 = vector.broadcast %43 : f32 to vector<8x64xf32>
    %54 = arith.addf %52, %53 : vector<8x64xf32>
    %c0_43 = arith.constant 0 : index
    %c1 = arith.constant 1 : index
    %c0_44 = arith.constant 0 : index
    %c0_45 = arith.constant 0 : index
    %55 = vector.load %arg22[%c0_43, %c1, %c0_44, %c0_45] : memref<1x4x8x64xf32, #tpu.memory_space<vmem>>, vector<1x1x8x64xf32>
    %56 = vector.shape_cast %55 : vector<1x1x8x64xf32> to vector<8x64xf32>
    %57 = vector.shape_cast %54 : vector<8x64xf32> to vector<1x1x8x64xf32>
    tpu.vector_store %arg22[%c0_43, %c1, %c0_44, %c0_45], %57 {strides = array<i32>} : memref<1x4x8x64xf32, #tpu.memory_space<vmem>>, vector<1x1x8x64xf32>,
    %58 = vector.extract_strided_slice %37 {offsets = [64, 0], sizes = [32, 64], strides = [1, 1]} : vector<128x64xf32> to vector<32x64xf32>
    %cst_46 = arith.constant dense<0.000000e+00> : vector<8x64xf32>
    %59 = tpu.matmul %38, %58, %cst_46 {dimension_numbers = #tpu.dot_dimension_numbers<[1], [0], [0], [1], [0, 0, 1, 1], [], []>} : vector<8x32xf32>, vector<32x64xf32>, vector<8x64xf32> -> vector<8x64xf32>
    %60 = vector.broadcast %43 : f32 to vector<8x64xf32>
    %61 = arith.addf %59, %60 : vector<8x64xf32>
    %c0_47 = arith.constant 0 : index
    %c2 = arith.constant 2 : index
    %c0_48 = arith.constant 0 : index
    %c0_49 = arith.constant 0 : index
    %62 = vector.load %arg22[%c0_47, %c2, %c0_48, %c0_49] : memref<1x4x8x64xf32, #tpu.memory_space<vmem>>, vector<1x1x8x64xf32>
    %63 = vector.shape_cast %62 : vector<1x1x8x64xf32> to vector<8x64xf32>
    %64 = vector.shape_cast %61 : vector<8x64xf32> to vector<1x1x8x64xf32>
    tpu.vector_store %arg22[%c0_47, %c2, %c0_48, %c0_49], %64 {strides = array<i32>} : memref<1x4x8x64xf32, #tpu.memory_space<vmem>>, vector<1x1x8x64xf32>,
    %65 = vector.extract_strided_slice %37 {offsets = [96, 0], sizes = [32, 64], strides = [1, 1]} : vector<128x64xf32> to vector<32x64xf32>
    %cst_50 = arith.constant dense<0.000000e+00> : vector<8x64xf32>
    %66 = tpu.matmul %38, %65, %cst_50 {dimension_numbers = #tpu.dot_dimension_numbers<[1], [0], [0], [1], [0, 0, 1, 1], [], []>} : vector<8x32xf32>, vector<32x64xf32>, vector<8x64xf32> -> vector<8x64xf32>
    %67 = vector.broadcast %43 : f32 to vector<8x64xf32>
    %68 = arith.addf %66, %67 : vector<8x64xf32>
    %c0_51 = arith.constant 0 : index
    %c3 = arith.constant 3 : index
    %c0_52 = arith.constant 0 : index
    %c0_53 = arith.constant 0 : index
    %69 = vector.load %arg22[%c0_51, %c3, %c0_52, %c0_53] : memref<1x4x8x64xf32, #tpu.memory_space<vmem>>, vector<1x1x8x64xf32>
    %70 = vector.shape_cast %69 : vector<1x1x8x64xf32> to vector<8x64xf32>
    %71 = vector.shape_cast %68 : vector<8x64xf32> to vector<1x1x8x64xf32>
    tpu.vector_store %arg22[%c0_51, %c3, %c0_52, %c0_53], %71 {strides = array<i32>} : memref<1x4x8x64xf32, #tpu.memory_space<vmem>>, vector<1x1x8x64xf32>,
    return
  }
  func.func @transform_0(%arg0: i32, %arg1: i32) -> i32 {
    %c0_i32 = arith.constant 0 : i32
    %c0_i32_0 = arith.constant 0 : i32
    return %c0_i32 : i32
  }
  func.func @transform_1(%arg0: i32, %arg1: i32) -> (i32, i32, i32) {
    %c0_i32 = arith.constant 0 : i32
    %c0_i32_0 = arith.constant 0 : i32
    return %arg0, %c0_i32, %arg1 : i32, i32, i32
  }
  func.func @transform_2(%arg0: i32, %arg1: i32) -> (i32, i32, i32) {
    %c0_i32 = arith.constant 0 : i32
    %c0_i32_0 = arith.constant 0 : i32
    %c0_i32_1 = arith.constant 0 : i32
    return %arg0, %c0_i32, %c0_i32_0 : i32, i32, i32
  }
  func.func @transform_3(%arg0: i32, %arg1: i32) -> (i32, i32) {
    %c0_i32 = arith.constant 0 : i32
    %c0_i32_0 = arith.constant 0 : i32
    %c0_i32_1 = arith.constant 0 : i32
    return %c0_i32, %c0_i32_0 : i32, i32
  }
  func.func @transform_4(%arg0: i32, %arg1: i32) -> (i32, i32) {
    %c0_i32 = arith.constant 0 : i32
    %c0_i32_0 = arith.constant 0 : i32
    %c0_i32_1 = arith.constant 0 : i32
    return %c0_i32, %c0_i32_0 : i32, i32
  }
  func.func @transform_5(%arg0: i32, %arg1: i32) -> (i32, i32) {
    %c0_i32 = arith.constant 0 : i32
    %c0_i32_0 = arith.constant 0 : i32
    %c0_i32_1 = arith.constant 0 : i32
    return %c0_i32, %c0_i32_0 : i32, i32
  }
  func.func @transform_6(%arg0: i32, %arg1: i32) -> (i32, i32) {
    %c0_i32 = arith.constant 0 : i32
    %c0_i32_0 = arith.constant 0 : i32
    %c0_i32_1 = arith.constant 0 : i32
    return %c0_i32, %c0_i32_0 : i32, i32
  }
  func.func @transform_7(%arg0: i32, %arg1: i32) -> (i32, i32) {
    %c0_i32 = arith.constant 0 : i32
    %c0_i32_0 = arith.constant 0 : i32
    %c0_i32_1 = arith.constant 0 : i32
    return %c0_i32, %c0_i32_0 : i32, i32
  }
  func.func @transform_8(%arg0: i32, %arg1: i32) -> (i32, i32) {
    %c0_i32 = arith.constant 0 : i32
    %c0_i32_0 = arith.constant 0 : i32
    %c0_i32_1 = arith.constant 0 : i32
    return %c0_i32, %c0_i32_0 : i32, i32
  }
  func.func @transform_9(%arg0: i32, %arg1: i32) -> (i32, i32) {
    %c0_i32 = arith.constant 0 : i32
    %c0_i32_0 = arith.constant 0 : i32
    %c0_i32_1 = arith.constant 0 : i32
    return %c0_i32, %c0_i32_0 : i32, i32
  }
  func.func @transform_10(%arg0: i32, %arg1: i32) -> (i32, i32) {
    %c0_i32 = arith.constant 0 : i32
    %c0_i32_0 = arith.constant 0 : i32
    %c0_i32_1 = arith.constant 0 : i32
    return %c0_i32, %c0_i32_0 : i32, i32
  }
  func.func @transform_11(%arg0: i32, %arg1: i32) -> (i32, i32) {
    %c0_i32 = arith.constant 0 : i32
    %c0_i32_0 = arith.constant 0 : i32
    %c0_i32_1 = arith.constant 0 : i32
    return %c0_i32, %c0_i32_0 : i32, i32
  }
  func.func @transform_12(%arg0: i32, %arg1: i32) -> (i32, i32) {
    %c0_i32 = arith.constant 0 : i32
    %c0_i32_0 = arith.constant 0 : i32
    %c0_i32_1 = arith.constant 0 : i32
    return %c0_i32, %c0_i32_0 : i32, i32
  }
  func.func @transform_13(%arg0: i32, %arg1: i32) -> (i32, i32) {
    %c0_i32 = arith.constant 0 : i32
    %c0_i32_0 = arith.constant 0 : i32
    %c0_i32_1 = arith.constant 0 : i32
    return %c0_i32, %c0_i32_0 : i32, i32
  }
  func.func @transform_14(%arg0: i32, %arg1: i32) -> (i32, i32) {
    %c0_i32 = arith.constant 0 : i32
    %c0_i32_0 = arith.constant 0 : i32
    %c0_i32_1 = arith.constant 0 : i32
    return %c0_i32, %c0_i32_0 : i32, i32
  }
  func.func @transform_15(%arg0: i32, %arg1: i32) -> (i32, i32) {
    %c0_i32 = arith.constant 0 : i32
    %c0_i32_0 = arith.constant 0 : i32
    %c0_i32_1 = arith.constant 0 : i32
    return %c0_i32, %c0_i32_0 : i32, i32
  }
  func.func @transform_16(%arg0: i32, %arg1: i32) -> (i32, i32) {
    %c0_i32 = arith.constant 0 : i32
    %c0_i32_0 = arith.constant 0 : i32
    %c0_i32_1 = arith.constant 0 : i32
    return %c0_i32, %c0_i32_0 : i32, i32
  }
  func.func @transform_17(%arg0: i32, %arg1: i32) -> (i32, i32) {
    %c0_i32 = arith.constant 0 : i32
    %c0_i32_0 = arith.constant 0 : i32
    %c0_i32_1 = arith.constant 0 : i32
    return %c0_i32, %c0_i32_0 : i32, i32
  }
  func.func @transform_18(%arg0: i32, %arg1: i32) -> (i32, i32) {
    %c0_i32 = arith.constant 0 : i32
    %c0_i32_0 = arith.constant 0 : i32
    %c0_i32_1 = arith.constant 0 : i32
    return %c0_i32, %c0_i32_0 : i32, i32
  }
  func.func @transform_19(%arg0: i32, %arg1: i32) -> (i32, i32, i32) {
    %c0_i32 = arith.constant 0 : i32
    %c0_i32_0 = arith.constant 0 : i32
    return %arg0, %c0_i32, %arg1 : i32, i32, i32
  }
  func.func @transform_20(%arg0: i32, %arg1: i32) -> (i32, i32, i32, i32) {
    %c0_i32 = arith.constant 0 : i32
    %c0_i32_0 = arith.constant 0 : i32
    %c0_i32_1 = arith.constant 0 : i32
    return %arg0, %c0_i32, %c0_i32_0, %arg1 : i32, i32, i32, i32
  }
}

</mosaic_0001>

<llo_original>
// kernel: mask_decoder_forward.1
$region0: #{mask_decoder_forward.1}
  #allocation0 [shape = 'u32[]', space=smem, size = 0x4, offset = 0x4, fixed_abs, tag = 'smem constant byte address 0x4 - core index']
  #allocation1 [shape = 'u32[144,128]{1,0:T(1,128)}', space=vmem, size = 0x12000, scoped, tag = 'internal scratch']
  #allocation2 [shape = 'f32[8,32]{1,0:T(8,128)}', space=vmem, size = 0x1000, scoped, tag = 'scratch operand']
  #allocation3 [shape = 'f32[1]{0:T(128)S(6)}', space=smem, size = 0x200, scoped, tag = 'scoped memory for mask_decoder_forward.1']
  %s0 = inlined_call_operand.<no memory space> [shape: f32[1], index: 0, kind: input, shape index: {}]
  %s1 = inlined_call_operand.vmem [shape: f32[2,32,64], index: 1, kind: input, shape index: {}]
  %s2 = inlined_call_operand.vmem [shape: f32[2,8,32], index: 2, kind: input, shape index: {}]
  %s3 = inlined_call_operand.vmem [shape: f32[32,64], index: 3, kind: input, shape index: {}]
  %s4 = inlined_call_operand.vmem [shape: f32[1,64], index: 4, kind: input, shape index: {}]
  %s5 = inlined_call_operand.vmem [shape: f32[64,64], index: 5, kind: input, shape index: {}]
  %s6 = inlined_call_operand.vmem [shape: f32[1,64], index: 6, kind: input, shape index: {}]
  %s7 = inlined_call_operand.vmem [shape: f32[64,32], index: 7, kind: input, shape index: {}]
  %s8 = inlined_call_operand.vmem [shape: f32[1,32], index: 8, kind: input, shape index: {}]
  %s9 = inlined_call_operand.vmem [shape: f32[128,32], index: 9, kind: input, shape index: {}]
  %s10 = inlined_call_operand.vmem [shape: f32[128,1], index: 10, kind: input, shape index: {}]
  %s11 = inlined_call_operand.vmem [shape: f32[64,64], index: 11, kind: input, shape index: {}]
  %s12 = inlined_call_operand.vmem [shape: f32[64,1], index: 12, kind: input, shape index: {}]
  %s13 = inlined_call_operand.vmem [shape: f32[32,64], index: 13, kind: input, shape index: {}]
  %s14 = inlined_call_operand.vmem [shape: f32[32,1], index: 14, kind: input, shape index: {}]
  %s15 = inlined_call_operand.vmem [shape: f32[64,64], index: 15, kind: input, shape index: {}]
  %s16 = inlined_call_operand.vmem [shape: f32[64,1], index: 16, kind: input, shape index: {}]
  %s17 = inlined_call_operand.vmem [shape: f32[128,64], index: 17, kind: input, shape index: {}]
  %s18 = inlined_call_operand.vmem [shape: f32[128,1], index: 18, kind: input, shape index: {}]
  %s19 = inlined_call_operand.vmem [shape: f32[2,8,64], index: 19, kind: output, shape index: {0}]
  %s20 = inlined_call_operand.vmem [shape: f32[2,4,8,64], index: 20, kind: output, shape index: {1}]
  %21 = xla_tuple %s19, %s20
  %s22 = sld [smem:[#allocation0]]
  $region121: #{mask_decoder_forward.1} parent=0
    _
  %s24 = ssub.s32 1, %s22
  %s25 = scalar_select 0, %s24, %s22
  %26 = sst [smem:[#allocation3]] %s0
  loop: start=0, step=1, limit=4
  $region2: #{mask_decoder_forward.1} parent=0 // loop_pre_header
    _
  $region3: #{mask_decoder_forward.1} parent=0 // loop_header
    %s28 = sphi 0, %s32
    %p29 = scmp.ge.s32.totalorder %s28, 4
    %s35 = sphi 0, %s47
    %s36 = sphi 0, %s43
    %s37 = sphi 0, %s35
    %s38 = sphi 0, %s36
    %s39 = sphi 0, %s37
    %s40 = sphi 0, %s38
    %s48 = sphi 0, %s48
    %s50 = sphi 0, %s48
    %s51 = sphi 0, %s50
    %s65 = sphi 0, %s51
    %s73 = sphi 0, %s75
    %s76 = sphi 0, %s73
    %s77 = sphi 0, %s76
    %s93 = sphi 0, %s77
    %s99 = sphi 0, %s101
    %s102 = sphi 0, %s99
    %s103 = sphi 0, %s102
    %s119 = sphi 0, %s103
    %s123 = sphi 0, %s123
    %s125 = sphi 0, %s123
    %s126 = sphi 0, %s125
    %s140 = sphi 0, %s126
    %s144 = sphi 0, %s144
    %s146 = sphi 0, %s144
    %s147 = sphi 0, %s146
    %s161 = sphi 0, %s147
    %s165 = sphi 0, %s165
    %s167 = sphi 0, %s165
    %s168 = sphi 0, %s167
    %s182 = sphi 0, %s168
    %s186 = sphi 0, %s186
    %s188 = sphi 0, %s186
    %s189 = sphi 0, %s188
    %s203 = sphi 0, %s189
    %s207 = sphi 0, %s207
    %s209 = sphi 0, %s207
    %s210 = sphi 0, %s209
    %s224 = sphi 0, %s210
    %s228 = sphi 0, %s228
    %s230 = sphi 0, %s228
    %s231 = sphi 0, %s230
    %s245 = sphi 0, %s231
    %s249 = sphi 0, %s249
    %s251 = sphi 0, %s249
    %s252 = sphi 0, %s251
    %s266 = sphi 0, %s252
    %s270 = sphi 0, %s270
    %s272 = sphi 0, %s270
    %s273 = sphi 0, %s272
    %s287 = sphi 0, %s273
    %s291 = sphi 0, %s291
    %s293 = sphi 0, %s291
    %s294 = sphi 0, %s293
    %s308 = sphi 0, %s294
    %s312 = sphi 0, %s312
    %s314 = sphi 0, %s312
    %s315 = sphi 0, %s314
    %s329 = sphi 0, %s315
    %s333 = sphi 0, %s333
    %s335 = sphi 0, %s333
    %s336 = sphi 0, %s335
    %s350 = sphi 0, %s336
    %s354 = sphi 0, %s354
    %s356 = sphi 0, %s354
    %s357 = sphi 0, %s356
    %s371 = sphi 0, %s357
    %s375 = sphi 0, %s375
    %s377 = sphi 0, %s375
    %s378 = sphi 0, %s377
    %s392 = sphi 0, %s378
    %s396 = sphi 0, %s396
    %s398 = sphi 0, %s396
    %s399 = sphi 0, %s398
    %s413 = sphi 0, %s399
    %s417 = sphi 0, %s417
    %s419 = sphi 0, %s417
    %s420 = sphi 0, %s419
    %s434 = sphi 0, %s420
    %s438 = sphi 0, %s438
    %s440 = sphi 0, %s438
    %s441 = sphi 0, %s440
    %s455 = sphi 0, %s441
    %s463 = sphi 0, %s465
    %s466 = sphi 0, %s463
    %s467 = sphi 0, %s466
    %s483 = sphi 0, %s467
    %s491 = sphi 0, %s493
    %s494 = sphi 0, %s491
    %s495 = sphi 0, %s494
    %s511 = sphi 0, %s495
  $region4: #{mask_decoder_forward.1} parent=0 // loop_header_branch
    %31 = sbr.rel (%p29) target = $region8
  $region5: #{mask_decoder_forward.1} parent=0 // loop_body
    %s33 = ssub.s32 %s28, 1
    %s34 = ssub.s32 %s28, 2
    %s41 = sadd.s32 1, %s36
    %p42 = scmp.ge.s32.totalorder %s41, 1
    %s43 = scalar_select %p42, 0, %s41
    %s44 = sadd.s32 1, %s35
    %s45 = scalar_select %p42, %s44, %s35
    %p46 = scmp.ge.s32.totalorder %s45, 2
    %s47 = scalar_select %p46, 0, %s45
    %s49 = sadd.s32 %s48, 1
    %p52 = scmp.eq.s32.totalorder %s28, 1
    %p53 = scmp.ne.s32.totalorder %s48, %s50
    %p54 = scmp.eq.s32.totalorder %s28, 0
    %p55 = por %p53, %p54
    %p56 = scmp.ne.s32.totalorder %s48, %s50
    %p57 = scmp.eq.s32.totalorder %s33, 1
    %p58 = por %p56, %p57
    %p59 = scmp.ne.s32.totalorder %s50, %s51
    %p60 = scmp.eq.s32.totalorder %s33, 0
    %p61 = por %p59, %p60
    %p62 = scmp.ne.s32.totalorder %s50, %s51
    %p63 = scmp.eq.s32.totalorder %s34, 1
    %p64 = por %p62, %p63
    %p66 = scmp.ne.s32.totalorder %s51, %s65
    %p67 = scmp.eq.s32.totalorder %s34, 0
    %p68 = por %p66, %p67
    %s69 = ssub.s32 %s35, %s47
    %s70 = ssub.s32 %s36, %s43
    %s71 = sor.u32 %s69, %s70
    %p72 = scmp.eq.s32.totalorder %s71, 0
    %s74 = sadd.s32 %s73, 1
    %s75 = scalar_select %p72, %s73, %s74
    %p78 = pneg %p72
    %p79 = scmp.eq.s32.totalorder %s28, 1
    %p80 = por %p78, %p79
    %p81 = scmp.ne.s32.totalorder %s73, %s76
    %p82 = scmp.eq.s32.totalorder %s28, 0
    %p83 = por %p81, %p82
    %p84 = scmp.ne.s32.totalorder %s73, %s76
    %p85 = scmp.eq.s32.totalorder %s33, 1
    %p86 = por %p84, %p85
    %p87 = scmp.ne.s32.totalorder %s76, %s77
    %p88 = scmp.eq.s32.totalorder %s33, 0
    %p89 = por %p87, %p88
    %p90 = scmp.ne.s32.totalorder %s76, %s77
    %p91 = scmp.eq.s32.totalorder %s34, 1
    %p92 = por %p90, %p91
    %p94 = scmp.ne.s32.totalorder %s77, %s93
    %p95 = scmp.eq.s32.totalorder %s34, 0
    %p96 = por %p94, %p95
    %s97 = ssub.s32 %s35, %s47
    %p98 = scmp.eq.s32.totalorder %s97, 0
    %s100 = sadd.s32 %s99, 1
    %s101 = scalar_select %p98, %s99, %s100
    %p104 = pneg %p98
    %p105 = scmp.eq.s32.totalorder %s28, 1
    %p106 = por %p104, %p105
    %p107 = scmp.ne.s32.totalorder %s99, %s102
    %p108 = scmp.eq.s32.totalorder %s28, 0
    %p109 = por %p107, %p108
    %p110 = scmp.ne.s32.totalorder %s99, %s102
    %p111 = scmp.eq.s32.totalorder %s33, 1
    %p112 = por %p110, %p111
    %p113 = scmp.ne.s32.totalorder %s102, %s103
    %p114 = scmp.eq.s32.totalorder %s33, 0
    %p115 = por %p113, %p114
    %p116 = scmp.ne.s32.totalorder %s102, %s103
    %p117 = scmp.eq.s32.totalorder %s34, 1
    %p118 = por %p116, %p117
    %p120 = scmp.ne.s32.totalorder %s103, %s119
    %p121 = scmp.eq.s32.totalorder %s34, 0
    %p122 = por %p120, %p121
    %s124 = sadd.s32 %s123, 1
    %p127 = scmp.eq.s32.totalorder %s28, 1
    %p128 = scmp.ne.s32.totalorder %s123, %s125
    %p129 = scmp.eq.s32.totalorder %s28, 0
    %p130 = por %p128, %p129
    %p131 = scmp.ne.s32.totalorder %s123, %s125
    %p132 = scmp.eq.s32.totalorder %s33, 1
    %p133 = por %p131, %p132
    %p134 = scmp.ne.s32.totalorder %s125, %s126
    %p135 = scmp.eq.s32.totalorder %s33, 0
    %p136 = por %p134, %p135
    %p137 = scmp.ne.s32.totalorder %s125, %s126
    %p138 = scmp.eq.s32.totalorder %s34, 1
    %p139 = por %p137, %p138
    %p141 = scmp.ne.s32.totalorder %s126, %s140
    %p142 = scmp.eq.s32.totalorder %s34, 0
    %p143 = por %p141, %p142
    %s145 = sadd.s32 %s144, 1
    %p148 = scmp.eq.s32.totalorder %s28, 1
    %p149 = scmp.ne.s32.totalorder %s144, %s146
    %p150 = scmp.eq.s32.totalorder %s28, 0
    %p151 = por %p149, %p150
    %p152 = scmp.ne.s32.totalorder %s144, %s146
    %p153 = scmp.eq.s32.totalorder %s33, 1
    %p154 = por %p152, %p153
    %p155 = scmp.ne.s32.totalorder %s146, %s147
    %p156 = scmp.eq.s32.totalorder %s33, 0
    %p157 = por %p155, %p156
    %p158 = scmp.ne.s32.totalorder %s146, %s147
    %p159 = scmp.eq.s32.totalorder %s34, 1
    %p160 = por %p158, %p159
    %p162 = scmp.ne.s32.totalorder %s147, %s161
    %p163 = scmp.eq.s32.totalorder %s34, 0
    %p164 = por %p162, %p163
    %s166 = sadd.s32 %s165, 1
    %p169 = scmp.eq.s32.totalorder %s28, 1
    %p170 = scmp.ne.s32.totalorder %s165, %s167
    %p171 = scmp.eq.s32.totalorder %s28, 0
    %p172 = por %p170, %p171
    %p173 = scmp.ne.s32.totalorder %s165, %s167
    %p174 = scmp.eq.s32.totalorder %s33, 1
    %p175 = por %p173, %p174
    %p176 = scmp.ne.s32.totalorder %s167, %s168
    %p177 = scmp.eq.s32.totalorder %s33, 0
    %p178 = por %p176, %p177
    %p179 = scmp.ne.s32.totalorder %s167, %s168
    %p180 = scmp.eq.s32.totalorder %s34, 1
    %p181 = por %p179, %p180
    %p183 = scmp.ne.s32.totalorder %s168, %s182
    %p184 = scmp.eq.s32.totalorder %s34, 0
    %p185 = por %p183, %p184
    %s187 = sadd.s32 %s186, 1
    %p190 = scmp.eq.s32.totalorder %s28, 1
    %p191 = scmp.ne.s32.totalorder %s186, %s188
    %p192 = scmp.eq.s32.totalorder %s28, 0
    %p193 = por %p191, %p192
    %p194 = scmp.ne.s32.totalorder %s186, %s188
    %p195 = scmp.eq.s32.totalorder %s33, 1
    %p196 = por %p194, %p195
    %p197 = scmp.ne.s32.totalorder %s188, %s189
    %p198 = scmp.eq.s32.totalorder %s33, 0
    %p199 = por %p197, %p198
    %p200 = scmp.ne.s32.totalorder %s188, %s189
    %p201 = scmp.eq.s32.totalorder %s34, 1
    %p202 = por %p200, %p201
    %p204 = scmp.ne.s32.totalorder %s189, %s203
    %p205 = scmp.eq.s32.totalorder %s34, 0
    %p206 = por %p204, %p205
    %s208 = sadd.s32 %s207, 1
    %p211 = scmp.eq.s32.totalorder %s28, 1
    %p212 = scmp.ne.s32.totalorder %s207, %s209
    %p213 = scmp.eq.s32.totalorder %s28, 0
    %p214 = por %p212, %p213
    %p215 = scmp.ne.s32.totalorder %s207, %s209
    %p216 = scmp.eq.s32.totalorder %s33, 1
    %p217 = por %p215, %p216
    %p218 = scmp.ne.s32.totalorder %s209, %s210
    %p219 = scmp.eq.s32.totalorder %s33, 0
    %p220 = por %p218, %p219
    %p221 = scmp.ne.s32.totalorder %s209, %s210
    %p222 = scmp.eq.s32.totalorder %s34, 1
    %p223 = por %p221, %p222
    %p225 = scmp.ne.s32.totalorder %s210, %s224
    %p226 = scmp.eq.s32.totalorder %s34, 0
    %p227 = por %p225, %p226
    %s229 = sadd.s32 %s228, 1
    %p232 = scmp.eq.s32.totalorder %s28, 1
    %p233 = scmp.ne.s32.totalorder %s228, %s230
    %p234 = scmp.eq.s32.totalorder %s28, 0
    %p235 = por %p233, %p234
    %p236 = scmp.ne.s32.totalorder %s228, %s230
    %p237 = scmp.eq.s32.totalorder %s33, 1
    %p238 = por %p236, %p237
    %p239 = scmp.ne.s32.totalorder %s230, %s231
    %p240 = scmp.eq.s32.totalorder %s33, 0
    %p241 = por %p239, %p240
    %p242 = scmp.ne.s32.totalorder %s230, %s231
    %p243 = scmp.eq.s32.totalorder %s34, 1
    %p244 = por %p242, %p243
    %p246 = scmp.ne.s32.totalorder %s231, %s245
    %p247 = scmp.eq.s32.totalorder %s34, 0
    %p248 = por %p246, %p247
    %s250 = sadd.s32 %s249, 1
    %p253 = scmp.eq.s32.totalorder %s28, 1
    %p254 = scmp.ne.s32.totalorder %s249, %s251
    %p255 = scmp.eq.s32.totalorder %s28, 0
    %p256 = por %p254, %p255
    %p257 = scmp.ne.s32.totalorder %s249, %s251
    %p258 = scmp.eq.s32.totalorder %s33, 1
    %p259 = por %p257, %p258
    %p260 = scmp.ne.s32.totalorder %s251, %s252
    %p261 = scmp.eq.s32.totalorder %s33, 0
    %p262 = por %p260, %p261
    %p263 = scmp.ne.s32.totalorder %s251, %s252
    %p264 = scmp.eq.s32.totalorder %s34, 1
    %p265 = por %p263, %p264
    %p267 = scmp.ne.s32.totalorder %s252, %s266
    %p268 = scmp.eq.s32.totalorder %s34, 0
    %p269 = por %p267, %p268
    %s271 = sadd.s32 %s270, 1
    %p274 = scmp.eq.s32.totalorder %s28, 1
    %p275 = scmp.ne.s32.totalorder %s270, %s272
    %p276 = scmp.eq.s32.totalorder %s28, 0
    %p277 = por %p275, %p276
    %p278 = scmp.ne.s32.totalorder %s270, %s272
    %p279 = scmp.eq.s32.totalorder %s33, 1
    %p280 = por %p278, %p279
    %p281 = scmp.ne.s32.totalorder %s272, %s273
    %p282 = scmp.eq.s32.totalorder %s33, 0
    %p283 = por %p281, %p282
    %p284 = scmp.ne.s32.totalorder %s272, %s273
    %p285 = scmp.eq.s32.totalorder %s34, 1
    %p286 = por %p284, %p285
    %p288 = scmp.ne.s32.totalorder %s273, %s287
    %p289 = scmp.eq.s32.totalorder %s34, 0
    %p290 = por %p288, %p289
    %s292 = sadd.s32 %s291, 1
    %p295 = scmp.eq.s32.totalorder %s28, 1
    %p296 = scmp.ne.s32.totalorder %s291, %s293
    %p297 = scmp.eq.s32.totalorder %s28, 0
    %p298 = por %p296, %p297
    %p299 = scmp.ne.s32.totalorder %s291, %s293
    %p300 = scmp.eq.s32.totalorder %s33, 1
    %p301 = por %p299, %p300
    %p302 = scmp.ne.s32.totalorder %s293, %s294
    %p303 = scmp.eq.s32.totalorder %s33, 0
    %p304 = por %p302, %p303
    %p305 = scmp.ne.s32.totalorder %s293, %s294
    %p306 = scmp.eq.s32.totalorder %s34, 1
    %p307 = por %p305, %p306
    %p309 = scmp.ne.s32.totalorder %s294, %s308
    %p310 = scmp.eq.s32.totalorder %s34, 0
    %p311 = por %p309, %p310
    %s313 = sadd.s32 %s312, 1
    %p316 = scmp.eq.s32.totalorder %s28, 1
    %p317 = scmp.ne.s32.totalorder %s312, %s314
    %p318 = scmp.eq.s32.totalorder %s28, 0
    %p319 = por %p317, %p318
    %p320 = scmp.ne.s32.totalorder %s312, %s314
    %p321 = scmp.eq.s32.totalorder %s33, 1
    %p322 = por %p320, %p321
    %p323 = scmp.ne.s32.totalorder %s314, %s315
    %p324 = scmp.eq.s32.totalorder %s33, 0
    %p325 = por %p323, %p324
    %p326 = scmp.ne.s32.totalorder %s314, %s315
    %p327 = scmp.eq.s32.totalorder %s34, 1
    %p328 = por %p326, %p327
    %p330 = scmp.ne.s32.totalorder %s315, %s329
    %p331 = scmp.eq.s32.totalorder %s34, 0
    %p332 = por %p330, %p331
    %s334 = sadd.s32 %s333, 1
    %p337 = scmp.eq.s32.totalorder %s28, 1
    %p338 = scmp.ne.s32.totalorder %s333, %s335
    %p339 = scmp.eq.s32.totalorder %s28, 0
    %p340 = por %p338, %p339
    %p341 = scmp.ne.s32.totalorder %s333, %s335
    %p342 = scmp.eq.s32.totalorder %s33, 1
    %p343 = por %p341, %p342
    %p344 = scmp.ne.s32.totalorder %s335, %s336
    %p345 = scmp.eq.s32.totalorder %s33, 0
    %p346 = por %p344, %p345
    %p347 = scmp.ne.s32.totalorder %s335, %s336
    %p348 = scmp.eq.s32.totalorder %s34, 1
    %p349 = por %p347, %p348
    %p351 = scmp.ne.s32.totalorder %s336, %s350
    %p352 = scmp.eq.s32.totalorder %s34, 0
    %p353 = por %p351, %p352
    %s355 = sadd.s32 %s354, 1
    %p358 = scmp.eq.s32.totalorder %s28, 1
    %p359 = scmp.ne.s32.totalorder %s354, %s356
    %p360 = scmp.eq.s32.totalorder %s28, 0
    %p361 = por %p359, %p360
    %p362 = scmp.ne.s32.totalorder %s354, %s356
    %p363 = scmp.eq.s32.totalorder %s33, 1
    %p364 = por %p362, %p363
    %p365 = scmp.ne.s32.totalorder %s356, %s357
    %p366 = scmp.eq.s32.totalorder %s33, 0
    %p367 = por %p365, %p366
    %p368 = scmp.ne.s32.totalorder %s356, %s357
    %p369 = scmp.eq.s32.totalorder %s34, 1
    %p370 = por %p368, %p369
    %p372 = scmp.ne.s32.totalorder %s357, %s371
    %p373 = scmp.eq.s32.totalorder %s34, 0
    %p374 = por %p372, %p373
    %s376 = sadd.s32 %s375, 1
    %p379 = scmp.eq.s32.totalorder %s28, 1
    %p380 = scmp.ne.s32.totalorder %s375, %s377
    %p381 = scmp.eq.s32.totalorder %s28, 0
    %p382 = por %p380, %p381
    %p383 = scmp.ne.s32.totalorder %s375, %s377
    %p384 = scmp.eq.s32.totalorder %s33, 1
    %p385 = por %p383, %p384
    %p386 = scmp.ne.s32.totalorder %s377, %s378
    %p387 = scmp.eq.s32.totalorder %s33, 0
    %p388 = por %p386, %p387
    %p389 = scmp.ne.s32.totalorder %s377, %s378
    %p390 = scmp.eq.s32.totalorder %s34, 1
    %p391 = por %p389, %p390
    %p393 = scmp.ne.s32.totalorder %s378, %s392
    %p394 = scmp.eq.s32.totalorder %s34, 0
    %p395 = por %p393, %p394
    %s397 = sadd.s32 %s396, 1
    %p400 = scmp.eq.s32.totalorder %s28, 1
    %p401 = scmp.ne.s32.totalorder %s396, %s398
    %p402 = scmp.eq.s32.totalorder %s28, 0
    %p403 = por %p401, %p402
    %p404 = scmp.ne.s32.totalorder %s396, %s398
    %p405 = scmp.eq.s32.totalorder %s33, 1
    %p406 = por %p404, %p405
    %p407 = scmp.ne.s32.totalorder %s398, %s399
    %p408 = scmp.eq.s32.totalorder %s33, 0
    %p409 = por %p407, %p408
    %p410 = scmp.ne.s32.totalorder %s398, %s399
    %p411 = scmp.eq.s32.totalorder %s34, 1
    %p412 = por %p410, %p411
    %p414 = scmp.ne.s32.totalorder %s399, %s413
    %p415 = scmp.eq.s32.totalorder %s34, 0
    %p416 = por %p414, %p415
    %s418 = sadd.s32 %s417, 1
    %p421 = scmp.eq.s32.totalorder %s28, 1
    %p422 = scmp.ne.s32.totalorder %s417, %s419
    %p423 = scmp.eq.s32.totalorder %s28, 0
    %p424 = por %p422, %p423
    %p425 = scmp.ne.s32.totalorder %s417, %s419
    %p426 = scmp.eq.s32.totalorder %s33, 1
    %p427 = por %p425, %p426
    %p428 = scmp.ne.s32.totalorder %s419, %s420
    %p429 = scmp.eq.s32.totalorder %s33, 0
    %p430 = por %p428, %p429
    %p431 = scmp.ne.s32.totalorder %s419, %s420
    %p432 = scmp.eq.s32.totalorder %s34, 1
    %p433 = por %p431, %p432
    %p435 = scmp.ne.s32.totalorder %s420, %s434
    %p436 = scmp.eq.s32.totalorder %s34, 0
    %p437 = por %p435, %p436
    %s439 = sadd.s32 %s438, 1
    %p442 = scmp.eq.s32.totalorder %s28, 1
    %p443 = scmp.ne.s32.totalorder %s438, %s440
    %p444 = scmp.eq.s32.totalorder %s28, 0
    %p445 = por %p443, %p444
    %p446 = scmp.ne.s32.totalorder %s438, %s440
    %p447 = scmp.eq.s32.totalorder %s33, 1
    %p448 = por %p446, %p447
    %p449 = scmp.ne.s32.totalorder %s440, %s441
    %p450 = scmp.eq.s32.totalorder %s33, 0
    %p451 = por %p449, %p450
    %p452 = scmp.ne.s32.totalorder %s440, %s441
    %p453 = scmp.eq.s32.totalorder %s34, 1
    %p454 = por %p452, %p453
    %p456 = scmp.ne.s32.totalorder %s441, %s455
    %p457 = scmp.eq.s32.totalorder %s34, 0
    %p458 = por %p456, %p457
    %s459 = ssub.s32 %s35, %s47
    %s460 = ssub.s32 %s36, %s43
    %s461 = sor.u32 %s459, %s460
    %p462 = scmp.eq.s32.totalorder %s461, 0
    %s464 = sadd.s32 %s463, 1
    %s465 = scalar_select %p462, %s463, %s464
    %p468 = pneg %p462
    %p469 = scmp.eq.s32.totalorder %s28, 1
    %p470 = por %p468, %p469
    %p471 = scmp.ne.s32.totalorder %s463, %s466
    %p472 = scmp.eq.s32.totalorder %s28, 0
    %p473 = por %p471, %p472
    %p474 = scmp.ne.s32.totalorder %s463, %s466
    %p475 = scmp.eq.s32.totalorder %s33, 1
    %p476 = por %p474, %p475
    %p477 = scmp.ne.s32.totalorder %s466, %s467
    %p478 = scmp.eq.s32.totalorder %s33, 0
    %p479 = por %p477, %p478
    %p480 = scmp.ne.s32.totalorder %s466, %s467
    %p481 = scmp.eq.s32.totalorder %s34, 1
    %p482 = por %p480, %p481
    %p484 = scmp.ne.s32.totalorder %s467, %s483
    %p485 = scmp.eq.s32.totalorder %s34, 0
    %p486 = por %p484, %p485
    %s487 = ssub.s32 %s35, %s47
    %s488 = ssub.s32 %s36, %s43
    %s489 = sor.u32 %s487, %s488
    %p490 = scmp.eq.s32.totalorder %s489, 0
    %s492 = sadd.s32 %s491, 1
    %s493 = scalar_select %p490, %s491, %s492
    %p496 = pneg %p490
    %p497 = scmp.eq.s32.totalorder %s28, 1
    %p498 = por %p496, %p497
    %p499 = scmp.ne.s32.totalorder %s491, %s494
    %p500 = scmp.eq.s32.totalorder %s28, 0
    %p501 = por %p499, %p500
    %p502 = scmp.ne.s32.totalorder %s491, %s494
    %p503 = scmp.eq.s32.totalorder %s33, 1
    %p504 = por %p502, %p503
    %p505 = scmp.ne.s32.totalorder %s494, %s495
    %p506 = scmp.eq.s32.totalorder %s33, 0
    %p507 = por %p505, %p506
    %p508 = scmp.ne.s32.totalorder %s494, %s495
    %p509 = scmp.eq.s32.totalorder %s34, 1
    %p510 = por %p508, %p509
    %p512 = scmp.ne.s32.totalorder %s495, %s511
    %p513 = scmp.eq.s32.totalorder %s34, 0
    %p514 = por %p512, %p513
    %p515 = scmp.le.s32.totalorder 1, %s28
    %p516 = scmp.lt.s32.totalorder %s28, 3
    %p517 = pnand %p515, %p516
    %p518 = pneg %p517
    // Predicated region
    $region9: #{mask_decoder_forward.1} parent=5 // pred_check
      _
    $region10: #{mask_decoder_forward.1} parent=5 // pred_check_branch
      %520 = sbr.rel (%p517) target = $region12
    $region11: #{mask_decoder_forward.1} parent=5 // pred_region
      %s521 = ssub.s32 %s28, 1
      // Predicated region
      $region13: #{mask_decoder_forward.1} parent=11 // pred_check
        %p522 = pneg %p61
      $region14: #{mask_decoder_forward.1} parent=11 // pred_check_branch
        %524 = sbr.rel (%p522) target = $region16
      $region15: #{mask_decoder_forward.1} parent=11 // pred_region
        _
      $region16: #{mask_decoder_forward.1} parent=11 // pred_fallthru
        _
      // Predicated region
      $region17: #{mask_decoder_forward.1} parent=11 // pred_check
        %p525 = pneg %p136
      $region18: #{mask_decoder_forward.1} parent=11 // pred_check_branch
        %527 = sbr.rel (%p525) target = $region20
      $region19: #{mask_decoder_forward.1} parent=11 // pred_region
        _
      $region20: #{mask_decoder_forward.1} parent=11 // pred_fallthru
        _
      // Predicated region
      $region21: #{mask_decoder_forward.1} parent=11 // pred_check
        %p528 = pneg %p157
      $region22: #{mask_decoder_forward.1} parent=11 // pred_check_branch
        %530 = sbr.rel (%p528) target = $region24
      $region23: #{mask_decoder_forward.1} parent=11 // pred_region
        _
      $region24: #{mask_decoder_forward.1} parent=11 // pred_fallthru
        _
      // Predicated region
      $region25: #{mask_decoder_forward.1} parent=11 // pred_check
        %p531 = pneg %p178
      $region26: #{mask_decoder_forward.1} parent=11 // pred_check_branch
        %533 = sbr.rel (%p531) target = $region28
      $region27: #{mask_decoder_forward.1} parent=11 // pred_region
        _
      $region28: #{mask_decoder_forward.1} parent=11 // pred_fallthru
        _
      // Predicated region
      $region29: #{mask_decoder_forward.1} parent=11 // pred_check
        %p534 = pneg %p199
      $region30: #{mask_decoder_forward.1} parent=11 // pred_check_branch
        %536 = sbr.rel (%p534) target = $region32
      $region31: #{mask_decoder_forward.1} parent=11 // pred_region
        _
      $region32: #{mask_decoder_forward.1} parent=11 // pred_fallthru
        _
      // Predicated region
      $region33: #{mask_decoder_forward.1} parent=11 // pred_check
        %p537 = pneg %p220
      $region34: #{mask_decoder_forward.1} parent=11 // pred_check_branch
        %539 = sbr.rel (%p537) target = $region36
      $region35: #{mask_decoder_forward.1} parent=11 // pred_region
        _
      $region36: #{mask_decoder_forward.1} parent=11 // pred_fallthru
        _
      // Predicated region
      $region37: #{mask_decoder_forward.1} parent=11 // pred_check
        %p540 = pneg %p241
      $region38: #{mask_decoder_forward.1} parent=11 // pred_check_branch
        %542 = sbr.rel (%p540) target = $region40
      $region39: #{mask_decoder_forward.1} parent=11 // pred_region
        _
      $region40: #{mask_decoder_forward.1} parent=11 // pred_fallthru
        _
      // Predicated region
      $region41: #{mask_decoder_forward.1} parent=11 // pred_check
        %p543 = pneg %p262
      $region42: #{mask_decoder_forward.1} parent=11 // pred_check_branch
        %545 = sbr.rel (%p543) target = $region44
      $region43: #{mask_decoder_forward.1} parent=11 // pred_region
        _
      $region44: #{mask_decoder_forward.1} parent=11 // pred_fallthru
        _
      // Predicated region
      $region45: #{mask_decoder_forward.1} parent=11 // pred_check
        %p546 = pneg %p283
      $region46: #{mask_decoder_forward.1} parent=11 // pred_check_branch
        %548 = sbr.rel (%p546) target = $region48
      $region47: #{mask_decoder_forward.1} parent=11 // pred_region
        _
      $region48: #{mask_decoder_forward.1} parent=11 // pred_fallthru
        _
      // Predicated region
      $region49: #{mask_decoder_forward.1} parent=11 // pred_check
        %p549 = pneg %p304
      $region50: #{mask_decoder_forward.1} parent=11 // pred_check_branch
        %551 = sbr.rel (%p549) target = $region52
      $region51: #{mask_decoder_forward.1} parent=11 // pred_region
        _
      $region52: #{mask_decoder_forward.1} parent=11 // pred_fallthru
        _
      // Predicated region
      $region53: #{mask_decoder_forward.1} parent=11 // pred_check
        %p552 = pneg %p325
      $region54: #{mask_decoder_forward.1} parent=11 // pred_check_branch
        %554 = sbr.rel (%p552) target = $region56
      $region55: #{mask_decoder_forward.1} parent=11 // pred_region
        _
      $region56: #{mask_decoder_forward.1} parent=11 // pred_fallthru
        _
      // Predicated region
      $region57: #{mask_decoder_forward.1} parent=11 // pred_check
        %p555 = pneg %p346
      $region58: #{mask_decoder_forward.1} parent=11 // pred_check_branch
        %557 = sbr.rel (%p555) target = $region60
      $region59: #{mask_decoder_forward.1} parent=11 // pred_region
        _
      $region60: #{mask_decoder_forward.1} parent=11 // pred_fallthru
        _
      // Predicated region
      $region61: #{mask_decoder_forward.1} parent=11 // pred_check
        %p558 = pneg %p367
      $region62: #{mask_decoder_forward.1} parent=11 // pred_check_branch
        %560 = sbr.rel (%p558) target = $region64
      $region63: #{mask_decoder_forward.1} parent=11 // pred_region
        _
      $region64: #{mask_decoder_forward.1} parent=11 // pred_fallthru
        _
      // Predicated region
      $region65: #{mask_decoder_forward.1} parent=11 // pred_check
        %p561 = pneg %p388
      $region66: #{mask_decoder_forward.1} parent=11 // pred_check_branch
        %563 = sbr.rel (%p561) target = $region68
      $region67: #{mask_decoder_forward.1} parent=11 // pred_region
        _
      $region68: #{mask_decoder_forward.1} parent=11 // pred_fallthru
        _
      // Predicated region
      $region69: #{mask_decoder_forward.1} parent=11 // pred_check
        %p564 = pneg %p409
      $region70: #{mask_decoder_forward.1} parent=11 // pred_check_branch
        %566 = sbr.rel (%p564) target = $region72
      $region71: #{mask_decoder_forward.1} parent=11 // pred_region
        _
      $region72: #{mask_decoder_forward.1} parent=11 // pred_fallthru
        _
      // Predicated region
      $region73: #{mask_decoder_forward.1} parent=11 // pred_check
        %p567 = pneg %p430
      $region74: #{mask_decoder_forward.1} parent=11 // pred_check_branch
        %569 = sbr.rel (%p567) target = $region76
      $region75: #{mask_decoder_forward.1} parent=11 // pred_region
        _
      $region76: #{mask_decoder_forward.1} parent=11 // pred_fallthru
        _
      // Predicated region
      $region77: #{mask_decoder_forward.1} parent=11 // pred_check
        %p570 = pneg %p451
      $region78: #{mask_decoder_forward.1} parent=11 // pred_check_branch
        %572 = sbr.rel (%p570) target = $region80
      $region79: #{mask_decoder_forward.1} parent=11 // pred_region
        _
      $region80: #{mask_decoder_forward.1} parent=11 // pred_fallthru
        _
    $region12: #{mask_decoder_forward.1} parent=5 // pred_fallthru
      _
    %p573 = scmp.lt.s32.totalorder %s28, 2
    // Predicated region
    $region81: #{mask_decoder_forward.1} parent=5 // pred_check
      %p574 = pneg %p573
    $region82: #{mask_decoder_forward.1} parent=5 // pred_check_branch
      %576 = sbr.rel (%p574) target = $region84
    $region83: #{mask_decoder_forward.1} parent=5 // pred_region
      // Predicated region
      $region85: #{mask_decoder_forward.1} parent=83 // pred_check
        %p577 = pneg %p83
      $region86: #{mask_decoder_forward.1} parent=83 // pred_check_branch
        %579 = sbr.rel (%p577) target = $region88
      $region87: #{mask_decoder_forward.1} parent=83 // pred_region
        %p580 = scmp.lt.s32.totalorder %s35, 1
        %s581 = scalar_select %p580, %s35, 1
        %p582 = scmp.lt.s32.totalorder %s36, 0
        %s583 = scalar_select %p582, %s36, 0
        %s584 = smul.addr %s581, 4
        %s585 = sadd.s32 %s583, %s584
        %s586 = smul.addr %s585, 8
        %s587 = scalar_lea.vmem %s1, %s586
      $region88: #{mask_decoder_forward.1} parent=83 // pred_fallthru
        _
      // Predicated region
      $region89: #{mask_decoder_forward.1} parent=83 // pred_check
        %p588 = pneg %p109
      $region90: #{mask_decoder_forward.1} parent=83 // pred_check_branch
        %590 = sbr.rel (%p588) target = $region92
      $region91: #{mask_decoder_forward.1} parent=83 // pred_region
        %p591 = scmp.lt.s32.totalorder %s35, 1
        %s592 = scalar_select %p591, %s35, 1
        %s593 = smul.addr %s592, 8
        %s594 = scalar_lea.vmem %s2, %s593
      $region92: #{mask_decoder_forward.1} parent=83 // pred_fallthru
        _
    $region84: #{mask_decoder_forward.1} parent=5 // pred_fallthru
      _
    %p595 = scmp.le.s32.totalorder 1, %s28
    %p596 = scmp.lt.s32.totalorder %s28, 3
    %p597 = pnand %p595, %p596
    %p598 = pneg %p597
    // Predicated region
    $region93: #{mask_decoder_forward.1} parent=5 // pred_check
      _
    $region94: #{mask_decoder_forward.1} parent=5 // pred_check_branch
      %600 = sbr.rel (%p597) target = $region96
    $region95: #{mask_decoder_forward.1} parent=5 // pred_region
      %s601 = ssub.s32 %s28, 1
      %p602 = pneg %p61
      %p603 = pneg %p58
      %p604 = scmp.lt.s32.totalorder %s37, 1
      %s605 = scalar_select %p604, %s37, 1
      %p606 = scmp.lt.s32.totalorder %s38, 0
      %s607 = scalar_select %p606, %s38, 0
      %s608 = smul.addr %s605, 4
      %s609 = sadd.s32 %s607, %s608
      %s610 = smul.addr %s609, 8
      %s611 = scalar_lea.vmem %s1, %s610
      %p612 = pneg %p89
      %p613 = pneg %p86
      %p614 = scmp.lt.s32.totalorder %s37, 1
      %s615 = scalar_select %p614, %s37, 1
      %s616 = smul.addr %s615, 8
      %s617 = scalar_lea.vmem %s2, %s616
      %p618 = pneg %p115
      %p619 = pneg %p112
      %p620 = pneg %p136
      %p621 = pneg %p133
      %p622 = pneg %p157
      %p623 = pneg %p154
      %p624 = pneg %p178
      %p625 = pneg %p175
      %p626 = pneg %p199
      %p627 = pneg %p196
      %p628 = pneg %p220
      %p629 = pneg %p217
      %p630 = pneg %p241
      %p631 = pneg %p238
      %p632 = pneg %p262
      %p633 = pneg %p259
      %p634 = pneg %p283
      %p635 = pneg %p280
      %p636 = pneg %p304
      %p637 = pneg %p301
      %p638 = pneg %p325
      %p639 = pneg %p322
      %p640 = pneg %p346
      %p641 = pneg %p343
      %p642 = pneg %p367
      %p643 = pneg %p364
      %p644 = pneg %p388
      %p645 = pneg %p385
      %p646 = pneg %p409
      %p647 = pneg %p406
      %p648 = pneg %p430
      %p649 = pneg %p427
      %p650 = pneg %p451
      %p651 = pneg %p448
      %p652 = pneg %p479
      %p653 = pneg %p476
      %p654 = scmp.lt.s32.totalorder %s37, 1
      %s655 = scalar_select %p654, %s37, 1
      %p656 = scmp.lt.s32.totalorder %s38, 0
      %s657 = scalar_select %p656, %s38, 0
      %s658 = sadd.s32 %s657, %s655
      %s659 = smul.addr %s658, 8
      %s660 = scalar_lea.vmem %s19, %s659
      %p661 = pneg %p507
      %p662 = pneg %p504
      %p663 = scmp.lt.s32.totalorder %s37, 1
      %s664 = scalar_select %p663, %s37, 1
      %p665 = scmp.lt.s32.totalorder %s38, 0
      %s666 = scalar_select %p665, %s38, 0
      %s667 = smul.addr %s664, 4
      %s668 = sadd.s32 %s666, %s667
      %s669 = smul.addr %s668, 8
      %s670 = scalar_lea.vmem %s20, %s669
      %p671 = scmp.lt.s32.totalorder %s37, 1
      %s672 = scalar_select %p671, %s37, 1
      %p673 = scmp.lt.s32.totalorder %s38, 0
      %s674 = scalar_select %p673, %s38, 0
      %s675 = smul.addr %s672, 4
      %s676 = sadd.s32 %s674, %s675
      %s677 = smul.addr %s676, 8
      %s678 = scalar_lea.vmem %s1, %s677
      %p679 = scmp.lt.s32.totalorder %s37, 1
      %s680 = scalar_select %p679, %s37, 1
      %s681 = smul.addr %s680, 8
      %s682 = scalar_lea.vmem %s2, %s681
      %p683 = scmp.lt.s32.totalorder %s37, 1
      %s684 = scalar_select %p683, %s37, 1
      %p685 = scmp.lt.s32.totalorder %s38, 0
      %s686 = scalar_select %p685, %s38, 0
      %s687 = sadd.s32 %s686, %s684
      %s688 = smul.addr %s687, 8
      %s689 = scalar_lea.vmem %s19, %s688
      %p690 = scmp.lt.s32.totalorder %s37, 1
      %s691 = scalar_select %p690, %s37, 1
      %p692 = scmp.lt.s32.totalorder %s38, 0
      %s693 = scalar_select %p692, %s38, 0
      %s694 = smul.addr %s691, 4
      %s695 = sadd.s32 %s693, %s694
      %s696 = smul.addr %s695, 8
      %s697 = scalar_lea.vmem %s20, %s696
      %p698 = scmp.eq.s32.totalorder %s38, 0
      // Predicated region
      $region97: #{mask_decoder_forward.1} parent=95 // pred_check
        %p699 = pneg %p698
      $region98: #{mask_decoder_forward.1} parent=95 // pred_check_branch
        %701 = sbr.rel (%p699) target = $region100
      $region99: #{mask_decoder_forward.1} parent=95 // pred_region
        %v702 = vld [vmem:[%s682] sm:$0xff]
        %v703 = vld [vmem:[%s3] sm:$0xff]
        %v704 = vld [vmem:[%s3 + $0x8] sm:$0xff]
        %v705 = vld [vmem:[%s3 + $0x10] sm:$0xff]
        %v706 = vld [vmem:[%s3 + $0x18] sm:$0xff]
        %v707 = vld [vmem:[%s4] sm:$0x1]
        %v709 = vlaneseq
        %v710 = vshrl.u32 %v709, 7
        %v711 = vsub.s32 0, %v710
        %v712 = vrot.slane %v707, %v711
        %vm714 = vcmask 261120
        %v716 = vsel %vm714, %v702, 0
        %718 = vmatprep.subr.mxu0 0.0
        %719 = vmatpush1.msra.mxu0 0.0
        %720 = vmatprep.subr.mxu0 0.0
        %721 = vmatpush1.msra.mxu0 0.0
        %722 = vmatprep.subr.mxu0 0.0
        %723 = vmatpush1.msra.mxu0 0.0
        %724 = vmatprep.subr.mxu0 0.0
        %725 = vmatpush1.msra.mxu0 0.0
        %726 = vmatprep.subr.mxu0 0.0
        %727 = vmatpush1.msra.mxu0 0.0
        %728 = vmatprep.subr.mxu0 0.0
        %729 = vmatpush1.msra.mxu0 0.0
        %730 = vmatprep.subr.mxu0 0.0
        %731 = vmatpush1.msra.mxu0 0.0
        %732 = vmatprep.subr.mxu0 0.0
        %733 = vmatpush1.msra.mxu0 0.0
        %734 = vmatprep.subr.mxu0 0.0
        %735 = vmatpush1.msra.mxu0 0.0
        %736 = vmatprep.subr.mxu0 0.0
        %737 = vmatpush1.msra.mxu0 0.0
        %738 = vmatprep.subr.mxu0 0.0
        %739 = vmatpush1.msra.mxu0 0.0
        %740 = vmatprep.subr.mxu0 0.0
        %741 = vmatpush1.msra.mxu0 0.0
        %742 = vmatprep.subr.mxu0 0.0
        %743 = vmatpush1.msra.mxu0 %v706
        %744 = vmatprep.subr.mxu0 0.0
        %745 = vmatpush1.msra.mxu0 %v705
        %746 = vmatprep.subr.mxu0 0.0
        %747 = vmatpush1.msra.mxu0 %v704
        %748 = vmatprep.subr.mxu0 0.0
        %749 = vmatpush1.msra.mxu0 %v703
        %750 = vmatprep.subr.mxu0 0.0
        %751 = vmatpush2.msra.mxu0 0.0
        %752 = vmatprep.subr.mxu0 0.0
        %753 = vmatpush2.msra.mxu0 0.0
        %754 = vmatprep.subr.mxu0 0.0
        %755 = vmatpush2.msra.mxu0 0.0
        %756 = vmatprep.subr.mxu0 0.0
        %757 = vmatpush2.msra.mxu0 0.0
        %758 = vmatprep.subr.mxu0 0.0
        %759 = vmatpush2.msra.mxu0 0.0
        %760 = vmatprep.subr.mxu0 0.0
        %761 = vmatpush2.msra.mxu0 0.0
        %762 = vmatprep.subr.mxu0 0.0
        %763 = vmatpush2.msra.mxu0 0.0
        %764 = vmatprep.subr.mxu0 0.0
        %765 = vmatpush2.msra.mxu0 0.0
        %766 = vmatprep.subr.mxu0 0.0
        %767 = vmatpush2.msra.mxu0 0.0
        %768 = vmatprep.subr.mxu0 0.0
        %769 = vmatpush2.msra.mxu0 0.0
        %770 = vmatprep.subr.mxu0 0.0
        %771 = vmatpush2.msra.mxu0 0.0
        %772 = vmatprep.subr.mxu0 0.0
        %773 = vmatpush2.msra.mxu0 0.0
        %774 = vmatprep.subr.mxu0 0.0
        %775 = vmatpush2.msra.mxu0 0.0
        %776 = vmatprep.subr.mxu0 0.0
        %777 = vmatpush2.msra.mxu0 0.0
        %778 = vmatprep.subr.mxu0 0.0
        %779 = vmatpush2.msra.mxu0 0.0
        %780 = vmatprep.subr.mxu0 0.0
        %781 = vmatpush2.msra.mxu0 0.0
        %782 = vmatprep.mubr.f32.mxu0 0.0
        %783 = vmatmul.mubr.f32.gmra.mxu0 %v716
        %v784 = vpop.f32.mrf.mxu0
        %v785 = vadd.f32 %v712, %v784
        %v786 = vpop.f32.mrf.mxu0
        %787 = vdwg.mxu0
        %v788 = vmax.f32 %v785, 0.0
        %v789 = vld [vmem:[%s5] sm:$0xff]
        %v790 = vld [vmem:[%s5 + $0x8] sm:$0xff]
        %v791 = vld [vmem:[%s5 + $0x10] sm:$0xff]
        %v792 = vld [vmem:[%s5 + $0x18] sm:$0xff]
        %v793 = vld [vmem:[%s5 + $0x20] sm:$0xff]
        %v794 = vld [vmem:[%s5 + $0x28] sm:$0xff]
        %v795 = vld [vmem:[%s5 + $0x30] sm:$0xff]
        %v796 = vld [vmem:[%s5 + $0x38] sm:$0xff]
        %v797 = vld [vmem:[%s6] sm:$0x1]
        %v799 = vlaneseq
        %v800 = vshrl.u32 %v799, 7
        %v801 = vsub.s32 0, %v800
        %v802 = vrot.slane %v797, %v801
        %vm804 = vcmask 523264
        %v806 = vsel %vm804, %v788, 0
        %808 = vmatprep.subr.mxu0 0.0
        %809 = vmatpush1.msra.mxu0 0.0
        %810 = vmatprep.subr.mxu0 0.0
        %811 = vmatpush1.msra.mxu0 0.0
        %812 = vmatprep.subr.mxu0 0.0
        %813 = vmatpush1.msra.mxu0 0.0
        %814 = vmatprep.subr.mxu0 0.0
        %815 = vmatpush1.msra.mxu0 0.0
        %816 = vmatprep.subr.mxu0 0.0
        %817 = vmatpush1.msra.mxu0 0.0
        %818 = vmatprep.subr.mxu0 0.0
        %819 = vmatpush1.msra.mxu0 0.0
        %820 = vmatprep.subr.mxu0 0.0
        %821 = vmatpush1.msra.mxu0 0.0
        %822 = vmatprep.subr.mxu0 0.0
        %823 = vmatpush1.msra.mxu0 0.0
        %824 = vmatprep.subr.mxu0 0.0
        %825 = vmatpush1.msra.mxu0 %v796
        %826 = vmatprep.subr.mxu0 0.0
        %827 = vmatpush1.msra.mxu0 %v795
        %828 = vmatprep.subr.mxu0 0.0
        %829 = vmatpush1.msra.mxu0 %v794
        %830 = vmatprep.subr.mxu0 0.0
        %831 = vmatpush1.msra.mxu0 %v793
        %832 = vmatprep.subr.mxu0 0.0
        %833 = vmatpush1.msra.mxu0 %v792
        %834 = vmatprep.subr.mxu0 0.0
        %835 = vmatpush1.msra.mxu0 %v791
        %836 = vmatprep.subr.mxu0 0.0
        %837 = vmatpush1.msra.mxu0 %v790
        %838 = vmatprep.subr.mxu0 0.0
        %839 = vmatpush1.msra.mxu0 %v789
        %840 = vmatprep.subr.mxu0 0.0
        %841 = vmatpush2.msra.mxu0 0.0
        %842 = vmatprep.subr.mxu0 0.0
        %843 = vmatpush2.msra.mxu0 0.0
        %844 = vmatprep.subr.mxu0 0.0
        %845 = vmatpush2.msra.mxu0 0.0
        %846 = vmatprep.subr.mxu0 0.0
        %847 = vmatpush2.msra.mxu0 0.0
        %848 = vmatprep.subr.mxu0 0.0
        %849 = vmatpush2.msra.mxu0 0.0
        %850 = vmatprep.subr.mxu0 0.0
        %851 = vmatpush2.msra.mxu0 0.0
        %852 = vmatprep.subr.mxu0 0.0
        %853 = vmatpush2.msra.mxu0 0.0
        %854 = vmatprep.subr.mxu0 0.0
        %855 = vmatpush2.msra.mxu0 0.0
        %856 = vmatprep.subr.mxu0 0.0
        %857 = vmatpush2.msra.mxu0 0.0
        %858 = vmatprep.subr.mxu0 0.0
        %859 = vmatpush2.msra.mxu0 0.0
        %860 = vmatprep.subr.mxu0 0.0
        %861 = vmatpush2.msra.mxu0 0.0
        %862 = vmatprep.subr.mxu0 0.0
        %863 = vmatpush2.msra.mxu0 0.0
        %864 = vmatprep.subr.mxu0 0.0
        %865 = vmatpush2.msra.mxu0 0.0
        %866 = vmatprep.subr.mxu0 0.0
        %867 = vmatpush2.msra.mxu0 0.0
        %868 = vmatprep.subr.mxu0 0.0
        %869 = vmatpush2.msra.mxu0 0.0
        %870 = vmatprep.subr.mxu0 0.0
        %871 = vmatpush2.msra.mxu0 0.0
        %872 = vmatprep.mubr.f32.mxu0 0.0
        %873 = vmatmul.mubr.f32.gmra.mxu0 %v806
        %v874 = vpop.f32.mrf.mxu0
        %v875 = vadd.f32 %v802, %v874
        %v876 = vpop.f32.mrf.mxu0
        %877 = vdwg.mxu0
        %v878 = vmax.f32 %v875, 0.0
        %v879 = vld [vmem:[%s7] sm:$0xff]
        %v880 = vld [vmem:[%s7 + $0x8] sm:$0xff]
        %v881 = vld [vmem:[%s7 + $0x10] sm:$0xff]
        %v882 = vld [vmem:[%s7 + $0x18] sm:$0xff]
        %v883 = vld [vmem:[%s7 + $0x20] sm:$0xff]
        %v884 = vld [vmem:[%s7 + $0x28] sm:$0xff]
        %v885 = vld [vmem:[%s7 + $0x30] sm:$0xff]
        %v886 = vld [vmem:[%s7 + $0x38] sm:$0xff]
        %v887 = vld [vmem:[%s8] sm:$0x1]
        %v889 = vlaneseq
        %v890 = vshrl.u32 %v889, 7
        %v891 = vsub.s32 0, %v890
        %v892 = vrot.slane %v887, %v891
        %v895 = vsel %vm804, %v878, 0
        %897 = vmatprep.subr.mxu0 0.0
        %898 = vmatpush1.msra.mxu0 0.0
        %899 = vmatprep.subr.mxu0 0.0
        %900 = vmatpush1.msra.mxu0 0.0
        %901 = vmatprep.subr.mxu0 0.0
        %902 = vmatpush1.msra.mxu0 0.0
        %903 = vmatprep.subr.mxu0 0.0
        %904 = vmatpush1.msra.mxu0 0.0
        %905 = vmatprep.subr.mxu0 0.0
        %906 = vmatpush1.msra.mxu0 0.0
        %907 = vmatprep.subr.mxu0 0.0
        %908 = vmatpush1.msra.mxu0 0.0
        %909 = vmatprep.subr.mxu0 0.0
        %910 = vmatpush1.msra.mxu0 0.0
        %911 = vmatprep.subr.mxu0 0.0
        %912 = vmatpush1.msra.mxu0 0.0
        %913 = vmatprep.subr.mxu0 0.0
        %914 = vmatpush1.msra.mxu0 %v886
        %915 = vmatprep.subr.mxu0 0.0
        %916 = vmatpush1.msra.mxu0 %v885
        %917 = vmatprep.subr.mxu0 0.0
        %918 = vmatpush1.msra.mxu0 %v884
        %919 = vmatprep.subr.mxu0 0.0
        %920 = vmatpush1.msra.mxu0 %v883
        %921 = vmatprep.subr.mxu0 0.0
        %922 = vmatpush1.msra.mxu0 %v882
        %923 = vmatprep.subr.mxu0 0.0
        %924 = vmatpush1.msra.mxu0 %v881
        %925 = vmatprep.subr.mxu0 0.0
        %926 = vmatpush1.msra.mxu0 %v880
        %927 = vmatprep.subr.mxu0 0.0
        %928 = vmatpush1.msra.mxu0 %v879
        %929 = vmatprep.subr.mxu0 0.0
        %930 = vmatpush2.msra.mxu0 0.0
        %931 = vmatprep.subr.mxu0 0.0
        %932 = vmatpush2.msra.mxu0 0.0
        %933 = vmatprep.subr.mxu0 0.0
        %934 = vmatpush2.msra.mxu0 0.0
        %935 = vmatprep.subr.mxu0 0.0
        %936 = vmatpush2.msra.mxu0 0.0
        %937 = vmatprep.subr.mxu0 0.0
        %938 = vmatpush2.msra.mxu0 0.0
        %939 = vmatprep.subr.mxu0 0.0
        %940 = vmatpush2.msra.mxu0 0.0
        %941 = vmatprep.subr.mxu0 0.0
        %942 = vmatpush2.msra.mxu0 0.0
        %943 = vmatprep.subr.mxu0 0.0
        %944 = vmatpush2.msra.mxu0 0.0
        %945 = vmatprep.subr.mxu0 0.0
        %946 = vmatpush2.msra.mxu0 0.0
        %947 = vmatprep.subr.mxu0 0.0
        %948 = vmatpush2.msra.mxu0 0.0
        %949 = vmatprep.subr.mxu0 0.0
        %950 = vmatpush2.msra.mxu0 0.0
        %951 = vmatprep.subr.mxu0 0.0
        %952 = vmatpush2.msra.mxu0 0.0
        %953 = vmatprep.subr.mxu0 0.0
        %954 = vmatpush2.msra.mxu0 0.0
        %955 = vmatprep.subr.mxu0 0.0
        %956 = vmatpush2.msra.mxu0 0.0
        %957 = vmatprep.subr.mxu0 0.0
        %958 = vmatpush2.msra.mxu0 0.0
        %959 = vmatprep.subr.mxu0 0.0
        %960 = vmatpush2.msra.mxu0 0.0
        %961 = vmatprep.mubr.f32.mxu0 0.0
        %962 = vmatmul.mubr.f32.gmra.mxu0 %v895
        %v963 = vpop.f32.mrf.mxu0
        %v964 = vadd.f32 %v892, %v963
        %v965 = vpop.f32.mrf.mxu0
        %966 = vdwg.mxu0
        %967 = vst.msk [vmem:[#allocation2] sm:$0xff] %vm714, %v964
      $region100: #{mask_decoder_forward.1} parent=95 // pred_fallthru
        _
      %v968 = vld [vmem:[%s678] sm:$0xff]
      %v969 = vld [vmem:[%s678 + $0x8] sm:$0xff]
      %v970 = vld [vmem:[%s678 + $0x10] sm:$0xff]
      %v971 = vld [vmem:[%s678 + $0x18] sm:$0xff]
      %v972 = vld [vmem:[%s9] sm:$0xff]
      %v973 = vld [vmem:[%s9 + $0x8] sm:$0xff]
      %v974 = vld [vmem:[%s9 + $0x10] sm:$0xff]
      %v975 = vld [vmem:[%s9 + $0x18] sm:$0xff]
      %v976 = vld [vmem:[%s9 + $0x20] sm:$0xff]
      %v977 = vld [vmem:[%s9 + $0x28] sm:$0xff]
      %v978 = vld [vmem:[%s9 + $0x30] sm:$0xff]
      %v979 = vld [vmem:[%s9 + $0x38] sm:$0xff]
      %v980 = vld [vmem:[%s9 + $0x40] sm:$0xff]
      %v981 = vld [vmem:[%s9 + $0x48] sm:$0xff]
      %v982 = vld [vmem:[%s9 + $0x50] sm:$0xff]
      %v983 = vld [vmem:[%s9 + $0x58] sm:$0xff]
      %v984 = vld [vmem:[%s9 + $0x60] sm:$0xff]
      %v985 = vld [vmem:[%s9 + $0x68] sm:$0xff]
      %v986 = vld [vmem:[%s9 + $0x70] sm:$0xff]
      %v987 = vld [vmem:[%s9 + $0x78] sm:$0xff]
      %v988 = vld [vmem:[%s10] sm:$0xff]
      %v989 = vld [vmem:[%s10 + $0x8] sm:$0xff]
      %v990 = vld [vmem:[%s10 + $0x10] sm:$0xff]
      %v991 = vld [vmem:[%s10 + $0x18] sm:$0xff]
      %v992 = vld [vmem:[%s10 + $0x20] sm:$0xff]
      %v993 = vld [vmem:[%s10 + $0x28] sm:$0xff]
      %v994 = vld [vmem:[%s10 + $0x30] sm:$0xff]
      %v995 = vld [vmem:[%s10 + $0x38] sm:$0xff]
      %v996 = vld [vmem:[%s10 + $0x40] sm:$0xff]
      %v997 = vld [vmem:[%s10 + $0x48] sm:$0xff]
      %v998 = vld [vmem:[%s10 + $0x50] sm:$0xff]
      %v999 = vld [vmem:[%s10 + $0x58] sm:$0xff]
      %v1000 = vld [vmem:[%s10 + $0x60] sm:$0xff]
      %v1001 = vld [vmem:[%s10 + $0x68] sm:$0xff]
      %v1002 = vld [vmem:[%s10 + $0x70] sm:$0xff]
      %v1003 = vld [vmem:[%s10 + $0x78] sm:$0xff]
      %1005 = vset.pattern.permute.xlu0 0
      %1006 = vperm.xlu0 %1005, %v988
      %v1007 = vpop.permute.xlu0 %1006
      %1010 = vset.pattern.permute.xlu0 0
      %1011 = vperm.xlu0 %1010, %v989
      %v1012 = vpop.permute.xlu0 %1011
      %1015 = vset.pattern.permute.xlu0 0
      %1016 = vperm.xlu0 %1015, %v990
      %v1017 = vpop.permute.xlu0 %1016
      %1020 = vset.pattern.permute.xlu0 0
      %1021 = vperm.xlu0 %1020, %v991
      %v1022 = vpop.permute.xlu0 %1021
      %1025 = vset.pattern.permute.xlu0 0
      %1026 = vperm.xlu0 %1025, %v992
      %v1027 = vpop.permute.xlu0 %1026
      %1030 = vset.pattern.permute.xlu0 0
      %1031 = vperm.xlu0 %1030, %v993
      %v1032 = vpop.permute.xlu0 %1031
      %1035 = vset.pattern.permute.xlu0 0
      %1036 = vperm.xlu0 %1035, %v994
      %v1037 = vpop.permute.xlu0 %1036
      %1040 = vset.pattern.permute.xlu0 0
      %1041 = vperm.xlu0 %1040, %v995
      %v1042 = vpop.permute.xlu0 %1041
      %1045 = vset.pattern.permute.xlu0 0
      %1046 = vperm.xlu0 %1045, %v996
      %v1047 = vpop.permute.xlu0 %1046
      %1050 = vset.pattern.permute.xlu0 0
      %1051 = vperm.xlu0 %1050, %v997
      %v1052 = vpop.permute.xlu0 %1051
      %1055 = vset.pattern.permute.xlu0 0
      %1056 = vperm.xlu0 %1055, %v998
      %v1057 = vpop.permute.xlu0 %1056
      %1060 = vset.pattern.permute.xlu0 0
      %1061 = vperm.xlu0 %1060, %v999
      %v1062 = vpop.permute.xlu0 %1061
      %1065 = vset.pattern.permute.xlu0 0
      %1066 = vperm.xlu0 %1065, %v1000
      %v1067 = vpop.permute.xlu0 %1066
      %1070 = vset.pattern.permute.xlu0 0
      %1071 = vperm.xlu0 %1070, %v1001
      %v1072 = vpop.permute.xlu0 %1071
      %1075 = vset.pattern.permute.xlu0 0
      %1076 = vperm.xlu0 %1075, %v1002
      %v1077 = vpop.permute.xlu0 %1076
      %1080 = vset.pattern.permute.xlu0 0
      %1081 = vperm.xlu0 %1080, %v1003
      %v1082 = vpop.permute.xlu0 %1081
      %vm1084 = vcmask 261120
      %v1086 = vsel %vm1084, %v972, 0
      %v1089 = vsel %vm1084, %v973, 0
      %v1092 = vsel %vm1084, %v974, 0
      %v1095 = vsel %vm1084, %v975, 0
      %v1098 = vsel %vm1084, %v976, 0
      %v1101 = vsel %vm1084, %v977, 0
      %v1104 = vsel %vm1084, %v978, 0
      %v1107 = vsel %vm1084, %v979, 0
      %v1110 = vsel %vm1084, %v980, 0
      %v1113 = vsel %vm1084, %v981, 0
      %v1116 = vsel %vm1084, %v982, 0
      %v1119 = vsel %vm1084, %v983, 0
      %v1122 = vsel %vm1084, %v984, 0
      %v1125 = vsel %vm1084, %v985, 0
      %v1128 = vsel %vm1084, %v986, 0
      %v1131 = vsel %vm1084, %v987, 0
      %1133 = vmatprep.subr.mxu0 0.0
      %1134 = vmatpush1.msra.mxu0 0.0
      %1135 = vmatprep.subr.mxu0 0.0
      %1136 = vmatpush1.msra.mxu0 0.0
      %1137 = vmatprep.subr.mxu0 0.0
      %1138 = vmatpush1.msra.mxu0 0.0
      %1139 = vmatprep.subr.mxu0 0.0
      %1140 = vmatpush1.msra.mxu0 0.0
      %1141 = vmatprep.subr.mxu0 0.0
      %1142 = vmatpush1.msra.mxu0 0.0
      %1143 = vmatprep.subr.mxu0 0.0
      %1144 = vmatpush1.msra.mxu0 0.0
      %1145 = vmatprep.subr.mxu0 0.0
      %1146 = vmatpush1.msra.mxu0 0.0
      %1147 = vmatprep.subr.mxu0 0.0
      %1148 = vmatpush1.msra.mxu0 0.0
      %1149 = vmatprep.subr.mxu0 0.0
      %1150 = vmatpush1.msra.mxu0 0.0
      %1151 = vmatprep.subr.mxu0 0.0
      %1152 = vmatpush1.msra.mxu0 0.0
      %1153 = vmatprep.subr.mxu0 0.0
      %1154 = vmatpush1.msra.mxu0 0.0
      %1155 = vmatprep.subr.mxu0 0.0
      %1156 = vmatpush1.msra.mxu0 0.0
      %1157 = vmatprep.subr.mxu0 0.0
      %1158 = vmatpush1.msra.mxu0 %v971
      %1159 = vmatprep.subr.mxu0 0.0
      %1160 = vmatpush1.msra.mxu0 %v970
      %1161 = vmatprep.subr.mxu0 0.0
      %1162 = vmatpush1.msra.mxu0 %v969
      %1163 = vmatprep.subr.mxu0 0.0
      %1164 = vmatpush1.msra.mxu0 %v968
      %1165 = vmatprep.subr.mxu0 0.0
      %1166 = vmatpush2.msra.mxu0 0.0
      %1167 = vmatprep.subr.mxu0 0.0
      %1168 = vmatpush2.msra.mxu0 0.0
      %1169 = vmatprep.subr.mxu0 0.0
      %1170 = vmatpush2.msra.mxu0 0.0
      %1171 = vmatprep.subr.mxu0 0.0
      %1172 = vmatpush2.msra.mxu0 0.0
      %1173 = vmatprep.subr.mxu0 0.0
      %1174 = vmatpush2.msra.mxu0 0.0
      %1175 = vmatprep.subr.mxu0 0.0
      %1176 = vmatpush2.msra.mxu0 0.0
      %1177 = vmatprep.subr.mxu0 0.0
      %1178 = vmatpush2.msra.mxu0 0.0
      %1179 = vmatprep.subr.mxu0 0.0
      %1180 = vmatpush2.msra.mxu0 0.0
      %1181 = vmatprep.subr.mxu0 0.0
      %1182 = vmatpush2.msra.mxu0 0.0
      %1183 = vmatprep.subr.mxu0 0.0
      %1184 = vmatpush2.msra.mxu0 0.0
      %1185 = vmatprep.subr.mxu0 0.0
      %1186 = vmatpush2.msra.mxu0 0.0
      %1187 = vmatprep.subr.mxu0 0.0
      %1188 = vmatpush2.msra.mxu0 0.0
      %1189 = vmatprep.subr.mxu0 0.0
      %1190 = vmatpush2.msra.mxu0 0.0
      %1191 = vmatprep.subr.mxu0 0.0
      %1192 = vmatpush2.msra.mxu0 0.0
      %1193 = vmatprep.subr.mxu0 0.0
      %1194 = vmatpush2.msra.mxu0 0.0
      %1195 = vmatprep.subr.mxu0 0.0
      %1196 = vmatpush2.msra.mxu0 0.0
      %1197 = vmatprep.mubr.f32.mxu0 0.0
      %1198 = vmatmul.mubr.f32.gmra.mxu0 %v1086
      %v1199 = vpop.f32.mrf.mxu0
      %v1200 = vadd.f32 %v1007, %v1199
      %v1201 = vpop.f32.mrf.mxu0
      %1202 = vmatprep.mubr.f32.mxu0 0.0
      %1203 = vmatmul.mubr.f32.gmra.mxu0 %v1089
      %v1204 = vpop.f32.mrf.mxu0
      %v1205 = vadd.f32 %v1012, %v1204
      %v1206 = vpop.f32.mrf.mxu0
      %1207 = vmatprep.mubr.f32.mxu0 0.0
      %1208 = vmatmul.mubr.f32.gmra.mxu0 %v1092
      %v1209 = vpop.f32.mrf.mxu0
      %v1210 = vadd.f32 %v1017, %v1209
      %v1211 = vpop.f32.mrf.mxu0
      %1212 = vmatprep.mubr.f32.mxu0 0.0
      %1213 = vmatmul.mubr.f32.gmra.mxu0 %v1095
      %v1214 = vpop.f32.mrf.mxu0
      %v1215 = vadd.f32 %v1022, %v1214
      %v1216 = vpop.f32.mrf.mxu0
      %1217 = vmatprep.mubr.f32.mxu0 0.0
      %1218 = vmatmul.mubr.f32.gmra.mxu0 %v1098
      %v1219 = vpop.f32.mrf.mxu0
      %v1220 = vadd.f32 %v1027, %v1219
      %v1221 = vpop.f32.mrf.mxu0
      %1222 = vmatprep.mubr.f32.mxu0 0.0
      %1223 = vmatmul.mubr.f32.gmra.mxu0 %v1101
      %v1224 = vpop.f32.mrf.mxu0
      %v1225 = vadd.f32 %v1032, %v1224
      %v1226 = vpop.f32.mrf.mxu0
      %1227 = vmatprep.mubr.f32.mxu0 0.0
      %1228 = vmatmul.mubr.f32.gmra.mxu0 %v1104
      %v1229 = vpop.f32.mrf.mxu0
      %v1230 = vadd.f32 %v1037, %v1229
      %v1231 = vpop.f32.mrf.mxu0
      %1232 = vmatprep.mubr.f32.mxu0 0.0
      %1233 = vmatmul.mubr.f32.gmra.mxu0 %v1107
      %v1234 = vpop.f32.mrf.mxu0
      %v1235 = vadd.f32 %v1042, %v1234
      %v1236 = vpop.f32.mrf.mxu0
      %1237 = vmatprep.mubr.f32.mxu0 0.0
      %1238 = vmatmul.mubr.f32.gmra.mxu0 %v1110
      %v1239 = vpop.f32.mrf.mxu0
      %v1240 = vadd.f32 %v1047, %v1239
      %v1241 = vpop.f32.mrf.mxu0
      %1242 = vmatprep.mubr.f32.mxu0 0.0
      %1243 = vmatmul.mubr.f32.gmra.mxu0 %v1113
      %v1244 = vpop.f32.mrf.mxu0
      %v1245 = vadd.f32 %v1052, %v1244
      %v1246 = vpop.f32.mrf.mxu0
      %1247 = vmatprep.mubr.f32.mxu0 0.0
      %1248 = vmatmul.mubr.f32.gmra.mxu0 %v1116
      %v1249 = vpop.f32.mrf.mxu0
      %v1250 = vadd.f32 %v1057, %v1249
      %v1251 = vpop.f32.mrf.mxu0
      %1252 = vmatprep.mubr.f32.mxu0 0.0
      %1253 = vmatmul.mubr.f32.gmra.mxu0 %v1119
      %v1254 = vpop.f32.mrf.mxu0
      %v1255 = vadd.f32 %v1062, %v1254
      %v1256 = vpop.f32.mrf.mxu0
      %1257 = vmatprep.mubr.f32.mxu0 0.0
      %1258 = vmatmul.mubr.f32.gmra.mxu0 %v1122
      %v1259 = vpop.f32.mrf.mxu0
      %v1260 = vadd.f32 %v1067, %v1259
      %v1261 = vpop.f32.mrf.mxu0
      %1262 = vmatprep.mubr.f32.mxu0 0.0
      %1263 = vmatmul.mubr.f32.gmra.mxu0 %v1125
      %v1264 = vpop.f32.mrf.mxu0
      %v1265 = vadd.f32 %v1072, %v1264
      %v1266 = vpop.f32.mrf.mxu0
      %1267 = vmatprep.mubr.f32.mxu0 0.0
      %1268 = vmatmul.mubr.f32.gmra.mxu0 %v1128
      %v1269 = vpop.f32.mrf.mxu0
      %v1270 = vadd.f32 %v1077, %v1269
      %v1271 = vpop.f32.mrf.mxu0
      %1272 = vmatprep.mubr.f32.mxu0 0.0
      %1273 = vmatmul.mubr.f32.gmra.mxu0 %v1131
      %v1274 = vpop.f32.mrf.mxu0
      %v1275 = vadd.f32 %v1082, %v1274
      %v1276 = vpop.f32.mrf.mxu0
      %1277 = vdwg.mxu0
      %v1278 = vmax.f32 %v1200, 0.0
      %v1279 = vmax.f32 %v1205, 0.0
      %v1280 = vmax.f32 %v1210, 0.0
      %v1281 = vmax.f32 %v1215, 0.0
      %v1282 = vmax.f32 %v1220, 0.0
      %v1283 = vmax.f32 %v1225, 0.0
      %v1284 = vmax.f32 %v1230, 0.0
      %v1285 = vmax.f32 %v1235, 0.0
      %v1286 = vmax.f32 %v1240, 0.0
      %v1287 = vmax.f32 %v1245, 0.0
      %v1288 = vmax.f32 %v1250, 0.0
      %v1289 = vmax.f32 %v1255, 0.0
      %v1290 = vmax.f32 %v1260, 0.0
      %v1291 = vmax.f32 %v1265, 0.0
      %v1292 = vmax.f32 %v1270, 0.0
      %v1293 = vmax.f32 %v1275, 0.0
      %v1294 = vld [vmem:[%s11] sm:$0xff]
      %v1295 = vld [vmem:[%s11 + $0x8] sm:$0xff]
      %v1296 = vld [vmem:[%s11 + $0x10] sm:$0xff]
      %v1297 = vld [vmem:[%s11 + $0x18] sm:$0xff]
      %v1298 = vld [vmem:[%s11 + $0x20] sm:$0xff]
      %v1299 = vld [vmem:[%s11 + $0x28] sm:$0xff]
      %v1300 = vld [vmem:[%s11 + $0x30] sm:$0xff]
      %v1301 = vld [vmem:[%s11 + $0x38] sm:$0xff]
      %v1302 = vld [vmem:[%s12] sm:$0xff]
      %v1303 = vld [vmem:[%s12 + $0x8] sm:$0xff]
      %v1304 = vld [vmem:[%s12 + $0x10] sm:$0xff]
      %v1305 = vld [vmem:[%s12 + $0x18] sm:$0xff]
      %v1306 = vld [vmem:[%s12 + $0x20] sm:$0xff]
      %v1307 = vld [vmem:[%s12 + $0x28] sm:$0xff]
      %v1308 = vld [vmem:[%s12 + $0x30] sm:$0xff]
      %v1309 = vld [vmem:[%s12 + $0x38] sm:$0xff]
      %1311 = vset.pattern.permute.xlu0 0
      %1312 = vperm.xlu0 %1311, %v1302
      %v1313 = vpop.permute.xlu0 %1312
      %1316 = vset.pattern.permute.xlu0 0
      %1317 = vperm.xlu0 %1316, %v1303
      %v1318 = vpop.permute.xlu0 %1317
      %1321 = vset.pattern.permute.xlu0 0
      %1322 = vperm.xlu0 %1321, %v1304
      %v1323 = vpop.permute.xlu0 %1322
      %1326 = vset.pattern.permute.xlu0 0
      %1327 = vperm.xlu0 %1326, %v1305
      %v1328 = vpop.permute.xlu0 %1327
      %1331 = vset.pattern.permute.xlu0 0
      %1332 = vperm.xlu0 %1331, %v1306
      %v1333 = vpop.permute.xlu0 %1332
      %1336 = vset.pattern.permute.xlu0 0
      %1337 = vperm.xlu0 %1336, %v1307
      %v1338 = vpop.permute.xlu0 %1337
      %1341 = vset.pattern.permute.xlu0 0
      %1342 = vperm.xlu0 %1341, %v1308
      %v1343 = vpop.permute.xlu0 %1342
      %1346 = vset.pattern.permute.xlu0 0
      %1347 = vperm.xlu0 %1346, %v1309
      %v1348 = vpop.permute.xlu0 %1347
      %vm1350 = vcmask 523264
      %v1352 = vsel %vm1350, %v1294, 0
      %v1355 = vsel %vm1350, %v1295, 0
      %v1358 = vsel %vm1350, %v1296, 0
      %v1361 = vsel %vm1350, %v1297, 0
      %v1364 = vsel %vm1350, %v1298, 0
      %v1367 = vsel %vm1350, %v1299, 0
      %v1370 = vsel %vm1350, %v1300, 0
      %v1373 = vsel %vm1350, %v1301, 0
      %1375 = vmatprep.subr.mxu0 0.0
      %1376 = vmatpush1.msra.mxu0 0.0
      %1377 = vmatprep.subr.mxu0 0.0
      %1378 = vmatpush1.msra.mxu0 0.0
      %1379 = vmatprep.subr.mxu0 0.0
      %1380 = vmatpush1.msra.mxu0 0.0
      %1381 = vmatprep.subr.mxu0 0.0
      %1382 = vmatpush1.msra.mxu0 0.0
      %1383 = vmatprep.subr.mxu0 0.0
      %1384 = vmatpush1.msra.mxu0 0.0
      %1385 = vmatprep.subr.mxu0 0.0
      %1386 = vmatpush1.msra.mxu0 0.0
      %1387 = vmatprep.subr.mxu0 0.0
      %1388 = vmatpush1.msra.mxu0 0.0
      %1389 = vmatprep.subr.mxu0 0.0
      %1390 = vmatpush1.msra.mxu0 0.0
      %1391 = vmatprep.subr.mxu0 0.0
      %1392 = vmatpush1.msra.mxu0 %v1285
      %1393 = vmatprep.subr.mxu0 0.0
      %1394 = vmatpush1.msra.mxu0 %v1284
      %1395 = vmatprep.subr.mxu0 0.0
      %1396 = vmatpush1.msra.mxu0 %v1283
      %1397 = vmatprep.subr.mxu0 0.0
      %1398 = vmatpush1.msra.mxu0 %v1282
      %1399 = vmatprep.subr.mxu0 0.0
      %1400 = vmatpush1.msra.mxu0 %v1281
      %1401 = vmatprep.subr.mxu0 0.0
      %1402 = vmatpush1.msra.mxu0 %v1280
      %1403 = vmatprep.subr.mxu0 0.0
      %1404 = vmatpush1.msra.mxu0 %v1279
      %1405 = vmatprep.subr.mxu0 0.0
      %1406 = vmatpush1.msra.mxu0 %v1278
      %1407 = vmatprep.subr.mxu0 0.0
      %1408 = vmatpush2.msra.mxu0 0.0
      %1409 = vmatprep.subr.mxu0 0.0
      %1410 = vmatpush2.msra.mxu0 0.0
      %1411 = vmatprep.subr.mxu0 0.0
      %1412 = vmatpush2.msra.mxu0 0.0
      %1413 = vmatprep.subr.mxu0 0.0
      %1414 = vmatpush2.msra.mxu0 0.0
      %1415 = vmatprep.subr.mxu0 0.0
      %1416 = vmatpush2.msra.mxu0 0.0
      %1417 = vmatprep.subr.mxu0 0.0
      %1418 = vmatpush2.msra.mxu0 0.0
      %1419 = vmatprep.subr.mxu0 0.0
      %1420 = vmatpush2.msra.mxu0 0.0
      %1421 = vmatprep.subr.mxu0 0.0
      %1422 = vmatpush2.msra.mxu0 0.0
      %1423 = vmatprep.subr.mxu0 0.0
      %1424 = vmatpush2.msra.mxu0 0.0
      %1425 = vmatprep.subr.mxu0 0.0
      %1426 = vmatpush2.msra.mxu0 0.0
      %1427 = vmatprep.subr.mxu0 0.0
      %1428 = vmatpush2.msra.mxu0 0.0
      %1429 = vmatprep.subr.mxu0 0.0
      %1430 = vmatpush2.msra.mxu0 0.0
      %1431 = vmatprep.subr.mxu0 0.0
      %1432 = vmatpush2.msra.mxu0 0.0
      %1433 = vmatprep.subr.mxu0 0.0
      %1434 = vmatpush2.msra.mxu0 0.0
      %1435 = vmatprep.subr.mxu0 0.0
      %1436 = vmatpush2.msra.mxu0 0.0
      %1437 = vmatprep.subr.mxu0 0.0
      %1438 = vmatpush2.msra.mxu0 0.0
      %1439 = vmatprep.mubr.f32.mxu0 0.0
      %1440 = vmatmul.mubr.f32.gmra.mxu0 %v1352
      %v1441 = vpop.f32.mrf.mxu0
      %v1442 = vadd.f32 %v1313, %v1441
      %v1443 = vpop.f32.mrf.mxu0
      %1444 = vmatprep.mubr.f32.mxu0 0.0
      %1445 = vmatmul.mubr.f32.gmra.mxu0 %v1355
      %v1446 = vpop.f32.mrf.mxu0
      %v1447 = vadd.f32 %v1318, %v1446
      %v1448 = vpop.f32.mrf.mxu0
      %1449 = vmatprep.mubr.f32.mxu0 0.0
      %1450 = vmatmul.mubr.f32.gmra.mxu0 %v1358
      %v1451 = vpop.f32.mrf.mxu0
      %v1452 = vadd.f32 %v1323, %v1451
      %v1453 = vpop.f32.mrf.mxu0
      %1454 = vmatprep.mubr.f32.mxu0 0.0
      %1455 = vmatmul.mubr.f32.gmra.mxu0 %v1361
      %v1456 = vpop.f32.mrf.mxu0
      %v1457 = vadd.f32 %v1328, %v1456
      %v1458 = vpop.f32.mrf.mxu0
      %1459 = vmatprep.mubr.f32.mxu0 0.0
      %1460 = vmatmul.mubr.f32.gmra.mxu0 %v1364
      %v1461 = vpop.f32.mrf.mxu0
      %v1462 = vadd.f32 %v1333, %v1461
      %v1463 = vpop.f32.mrf.mxu0
      %1464 = vmatprep.mubr.f32.mxu0 0.0
      %1465 = vmatmul.mubr.f32.gmra.mxu0 %v1367
      %v1466 = vpop.f32.mrf.mxu0
      %v1467 = vadd.f32 %v1338, %v1466
      %v1468 = vpop.f32.mrf.mxu0
      %1469 = vmatprep.mubr.f32.mxu0 0.0
      %1470 = vmatmul.mubr.f32.gmra.mxu0 %v1370
      %v1471 = vpop.f32.mrf.mxu0
      %v1472 = vadd.f32 %v1343, %v1471
      %v1473 = vpop.f32.mrf.mxu0
      %1474 = vmatprep.mubr.f32.mxu0 0.0
      %1475 = vmatmul.mubr.f32.gmra.mxu0 %v1373
      %v1476 = vpop.f32.mrf.mxu0
      %v1477 = vadd.f32 %v1348, %v1476
      %v1478 = vpop.f32.mrf.mxu0
      %1479 = vdwg.mxu0
      %v1480 = vmax.f32 %v1442, 0.0
      %v1481 = vmax.f32 %v1447, 0.0
      %v1482 = vmax.f32 %v1452, 0.0
      %v1483 = vmax.f32 %v1457, 0.0
      %v1484 = vmax.f32 %v1462, 0.0
      %v1485 = vmax.f32 %v1467, 0.0
      %v1486 = vmax.f32 %v1472, 0.0
      %v1487 = vmax.f32 %v1477, 0.0
      %v1488 = vld [vmem:[%s13] sm:$0xff]
      %v1489 = vld [vmem:[%s13 + $0x8] sm:$0xff]
      %v1490 = vld [vmem:[%s13 + $0x10] sm:$0xff]
      %v1491 = vld [vmem:[%s13 + $0x18] sm:$0xff]
      %v1492 = vld [vmem:[%s14] sm:$0xff]
      %v1493 = vld [vmem:[%s14 + $0x8] sm:$0xff]
      %v1494 = vld [vmem:[%s14 + $0x10] sm:$0xff]
      %v1495 = vld [vmem:[%s14 + $0x18] sm:$0xff]
      %1497 = vset.pattern.permute.xlu0 0
      %1498 = vperm.xlu0 %1497, %v1492
      %v1499 = vpop.permute.xlu0 %1498
      %1502 = vset.pattern.permute.xlu0 0
      %1503 = vperm.xlu0 %1502, %v1493
      %v1504 = vpop.permute.xlu0 %1503
      %1507 = vset.pattern.permute.xlu0 0
      %1508 = vperm.xlu0 %1507, %v1494
      %v1509 = vpop.permute.xlu0 %1508
      %1512 = vset.pattern.permute.xlu0 0
      %1513 = vperm.xlu0 %1512, %v1495
      %v1514 = vpop.permute.xlu0 %1513
      %v1517 = vsel %vm1350, %v1488, 0
      %v1520 = vsel %vm1350, %v1489, 0
      %v1523 = vsel %vm1350, %v1490, 0
      %v1526 = vsel %vm1350, %v1491, 0
      %1528 = vmatprep.subr.mxu0 0.0
      %1529 = vmatpush1.msra.mxu0 0.0
      %1530 = vmatprep.subr.mxu0 0.0
      %1531 = vmatpush1.msra.mxu0 0.0
      %1532 = vmatprep.subr.mxu0 0.0
      %1533 = vmatpush1.msra.mxu0 0.0
      %1534 = vmatprep.subr.mxu0 0.0
      %1535 = vmatpush1.msra.mxu0 0.0
      %1536 = vmatprep.subr.mxu0 0.0
      %1537 = vmatpush1.msra.mxu0 0.0
      %1538 = vmatprep.subr.mxu0 0.0
      %1539 = vmatpush1.msra.mxu0 0.0
      %1540 = vmatprep.subr.mxu0 0.0
      %1541 = vmatpush1.msra.mxu0 0.0
      %1542 = vmatprep.subr.mxu0 0.0
      %1543 = vmatpush1.msra.mxu0 0.0
      %1544 = vmatprep.subr.mxu0 0.0
      %1545 = vmatpush1.msra.mxu0 %v1487
      %1546 = vmatprep.subr.mxu0 0.0
      %1547 = vmatpush1.msra.mxu0 %v1486
      %1548 = vmatprep.subr.mxu0 0.0
      %1549 = vmatpush1.msra.mxu0 %v1485
      %1550 = vmatprep.subr.mxu0 0.0
      %1551 = vmatpush1.msra.mxu0 %v1484
      %1552 = vmatprep.subr.mxu0 0.0
      %1553 = vmatpush1.msra.mxu0 %v1483
      %1554 = vmatprep.subr.mxu0 0.0
      %1555 = vmatpush1.msra.mxu0 %v1482
      %1556 = vmatprep.subr.mxu0 0.0
      %1557 = vmatpush1.msra.mxu0 %v1481
      %1558 = vmatprep.subr.mxu0 0.0
      %1559 = vmatpush1.msra.mxu0 %v1480
      %1560 = vmatprep.subr.mxu0 0.0
      %1561 = vmatpush2.msra.mxu0 0.0
      %1562 = vmatprep.subr.mxu0 0.0
      %1563 = vmatpush2.msra.mxu0 0.0
      %1564 = vmatprep.subr.mxu0 0.0
      %1565 = vmatpush2.msra.mxu0 0.0
      %1566 = vmatprep.subr.mxu0 0.0
      %1567 = vmatpush2.msra.mxu0 0.0
      %1568 = vmatprep.subr.mxu0 0.0
      %1569 = vmatpush2.msra.mxu0 0.0
      %1570 = vmatprep.subr.mxu0 0.0
      %1571 = vmatpush2.msra.mxu0 0.0
      %1572 = vmatprep.subr.mxu0 0.0
      %1573 = vmatpush2.msra.mxu0 0.0
      %1574 = vmatprep.subr.mxu0 0.0
      %1575 = vmatpush2.msra.mxu0 0.0
      %1576 = vmatprep.subr.mxu0 0.0
      %1577 = vmatpush2.msra.mxu0 0.0
      %1578 = vmatprep.subr.mxu0 0.0
      %1579 = vmatpush2.msra.mxu0 0.0
      %1580 = vmatprep.subr.mxu0 0.0
      %1581 = vmatpush2.msra.mxu0 0.0
      %1582 = vmatprep.subr.mxu0 0.0
      %1583 = vmatpush2.msra.mxu0 0.0
      %1584 = vmatprep.subr.mxu0 0.0
      %1585 = vmatpush2.msra.mxu0 0.0
      %1586 = vmatprep.subr.mxu0 0.0
      %1587 = vmatpush2.msra.mxu0 0.0
      %1588 = vmatprep.subr.mxu0 0.0
      %1589 = vmatpush2.msra.mxu0 0.0
      %1590 = vmatprep.subr.mxu0 0.0
      %1591 = vmatpush2.msra.mxu0 0.0
      %1592 = vmatprep.mubr.f32.mxu0 0.0
      %1593 = vmatmul.mubr.f32.gmra.mxu0 %v1517
      %v1594 = vpop.f32.mrf.mxu0
      %v1595 = vadd.f32 %v1499, %v1594
      %v1596 = vpop.f32.mrf.mxu0
      %1597 = vmatprep.mubr.f32.mxu0 0.0
      %1598 = vmatmul.mubr.f32.gmra.mxu0 %v1520
      %v1599 = vpop.f32.mrf.mxu0
      %v1600 = vadd.f32 %v1504, %v1599
      %v1601 = vpop.f32.mrf.mxu0
      %1602 = vmatprep.mubr.f32.mxu0 0.0
      %1603 = vmatmul.mubr.f32.gmra.mxu0 %v1523
      %v1604 = vpop.f32.mrf.mxu0
      %v1605 = vadd.f32 %v1509, %v1604
      %v1606 = vpop.f32.mrf.mxu0
      %1607 = vmatprep.mubr.f32.mxu0 0.0
      %1608 = vmatmul.mubr.f32.gmra.mxu0 %v1526
      %v1609 = vpop.f32.mrf.mxu0
      %v1610 = vadd.f32 %v1514, %v1609
      %v1611 = vpop.f32.mrf.mxu0
      %1612 = vdwg.mxu0
      %v1613 = vld [vmem:[%s15] sm:$0xff]
      %v1614 = vld [vmem:[%s15 + $0x8] sm:$0xff]
      %v1615 = vld [vmem:[%s15 + $0x10] sm:$0xff]
      %v1616 = vld [vmem:[%s15 + $0x18] sm:$0xff]
      %v1617 = vld [vmem:[%s15 + $0x20] sm:$0xff]
      %v1618 = vld [vmem:[%s15 + $0x28] sm:$0xff]
      %v1619 = vld [vmem:[%s15 + $0x30] sm:$0xff]
      %v1620 = vld [vmem:[%s15 + $0x38] sm:$0xff]
      %v1621 = vld [vmem:[%s16] sm:$0xff]
      %v1622 = vld [vmem:[%s16 + $0x8] sm:$0xff]
      %v1623 = vld [vmem:[%s16 + $0x10] sm:$0xff]
      %v1624 = vld [vmem:[%s16 + $0x18] sm:$0xff]
      %v1625 = vld [vmem:[%s16 + $0x20] sm:$0xff]
      %v1626 = vld [vmem:[%s16 + $0x28] sm:$0xff]
      %v1627 = vld [vmem:[%s16 + $0x30] sm:$0xff]
      %v1628 = vld [vmem:[%s16 + $0x38] sm:$0xff]
      %1630 = vset.pattern.permute.xlu0 0
      %1631 = vperm.xlu0 %1630, %v1621
      %v1632 = vpop.permute.xlu0 %1631
      %1635 = vset.pattern.permute.xlu0 0
      %1636 = vperm.xlu0 %1635, %v1622
      %v1637 = vpop.permute.xlu0 %1636
      %1640 = vset.pattern.permute.xlu0 0
      %1641 = vperm.xlu0 %1640, %v1623
      %v1642 = vpop.permute.xlu0 %1641
      %1645 = vset.pattern.permute.xlu0 0
      %1646 = vperm.xlu0 %1645, %v1624
      %v1647 = vpop.permute.xlu0 %1646
      %1650 = vset.pattern.permute.xlu0 0
      %1651 = vperm.xlu0 %1650, %v1625
      %v1652 = vpop.permute.xlu0 %1651
      %1655 = vset.pattern.permute.xlu0 0
      %1656 = vperm.xlu0 %1655, %v1626
      %v1657 = vpop.permute.xlu0 %1656
      %1660 = vset.pattern.permute.xlu0 0
      %1661 = vperm.xlu0 %1660, %v1627
      %v1662 = vpop.permute.xlu0 %1661
      %1665 = vset.pattern.permute.xlu0 0
      %1666 = vperm.xlu0 %1665, %v1628
      %v1667 = vpop.permute.xlu0 %1666
      %v1670 = vsel %vm1350, %v1613, 0
      %v1673 = vsel %vm1350, %v1614, 0
      %v1676 = vsel %vm1350, %v1615, 0
      %v1679 = vsel %vm1350, %v1616, 0
      %v1682 = vsel %vm1350, %v1617, 0
      %v1685 = vsel %vm1350, %v1618, 0
      %v1688 = vsel %vm1350, %v1619, 0
      %v1691 = vsel %vm1350, %v1620, 0
      %1693 = vmatprep.subr.mxu0 0.0
      %1694 = vmatpush1.msra.mxu0 0.0
      %1695 = vmatprep.subr.mxu0 0.0
      %1696 = vmatpush1.msra.mxu0 0.0
      %1697 = vmatprep.subr.mxu0 0.0
      %1698 = vmatpush1.msra.mxu0 0.0
      %1699 = vmatprep.subr.mxu0 0.0
      %1700 = vmatpush1.msra.mxu0 0.0
      %1701 = vmatprep.subr.mxu0 0.0
      %1702 = vmatpush1.msra.mxu0 0.0
      %1703 = vmatprep.subr.mxu0 0.0
      %1704 = vmatpush1.msra.mxu0 0.0
      %1705 = vmatprep.subr.mxu0 0.0
      %1706 = vmatpush1.msra.mxu0 0.0
      %1707 = vmatprep.subr.mxu0 0.0
      %1708 = vmatpush1.msra.mxu0 0.0
      %1709 = vmatprep.subr.mxu0 0.0
      %1710 = vmatpush1.msra.mxu0 %v1293
      %1711 = vmatprep.subr.mxu0 0.0
      %1712 = vmatpush1.msra.mxu0 %v1292
      %1713 = vmatprep.subr.mxu0 0.0
      %1714 = vmatpush1.msra.mxu0 %v1291
      %1715 = vmatprep.subr.mxu0 0.0
      %1716 = vmatpush1.msra.mxu0 %v1290
      %1717 = vmatprep.subr.mxu0 0.0
      %1718 = vmatpush1.msra.mxu0 %v1289
      %1719 = vmatprep.subr.mxu0 0.0
      %1720 = vmatpush1.msra.mxu0 %v1288
      %1721 = vmatprep.subr.mxu0 0.0
      %1722 = vmatpush1.msra.mxu0 %v1287
      %1723 = vmatprep.subr.mxu0 0.0
      %1724 = vmatpush1.msra.mxu0 %v1286
      %1725 = vmatprep.subr.mxu0 0.0
      %1726 = vmatpush2.msra.mxu0 0.0
      %1727 = vmatprep.subr.mxu0 0.0
      %1728 = vmatpush2.msra.mxu0 0.0
      %1729 = vmatprep.subr.mxu0 0.0
      %1730 = vmatpush2.msra.mxu0 0.0
      %1731 = vmatprep.subr.mxu0 0.0
      %1732 = vmatpush2.msra.mxu0 0.0
      %1733 = vmatprep.subr.mxu0 0.0
      %1734 = vmatpush2.msra.mxu0 0.0
      %1735 = vmatprep.subr.mxu0 0.0
      %1736 = vmatpush2.msra.mxu0 0.0
      %1737 = vmatprep.subr.mxu0 0.0
      %1738 = vmatpush2.msra.mxu0 0.0
      %1739 = vmatprep.subr.mxu0 0.0
      %1740 = vmatpush2.msra.mxu0 0.0
      %1741 = vmatprep.subr.mxu0 0.0
      %1742 = vmatpush2.msra.mxu0 0.0
      %1743 = vmatprep.subr.mxu0 0.0
      %1744 = vmatpush2.msra.mxu0 0.0
      %1745 = vmatprep.subr.mxu0 0.0
      %1746 = vmatpush2.msra.mxu0 0.0
      %1747 = vmatprep.subr.mxu0 0.0
      %1748 = vmatpush2.msra.mxu0 0.0
      %1749 = vmatprep.subr.mxu0 0.0
      %1750 = vmatpush2.msra.mxu0 0.0
      %1751 = vmatprep.subr.mxu0 0.0
      %1752 = vmatpush2.msra.mxu0 0.0
      %1753 = vmatprep.subr.mxu0 0.0
      %1754 = vmatpush2.msra.mxu0 0.0
      %1755 = vmatprep.subr.mxu0 0.0
      %1756 = vmatpush2.msra.mxu0 0.0
      %1757 = vmatprep.mubr.f32.mxu0 0.0
      %1758 = vmatmul.mubr.f32.gmra.mxu0 %v1670
      %v1759 = vpop.f32.mrf.mxu0
      %v1760 = vadd.f32 %v1632, %v1759
      %v1761 = vpop.f32.mrf.mxu0
      %1762 = vmatprep.mubr.f32.mxu0 0.0
      %1763 = vmatmul.mubr.f32.gmra.mxu0 %v1673
      %v1764 = vpop.f32.mrf.mxu0
      %v1765 = vadd.f32 %v1637, %v1764
      %v1766 = vpop.f32.mrf.mxu0
      %1767 = vmatprep.mubr.f32.mxu0 0.0
      %1768 = vmatmul.mubr.f32.gmra.mxu0 %v1676
      %v1769 = vpop.f32.mrf.mxu0
      %v1770 = vadd.f32 %v1642, %v1769
      %v1771 = vpop.f32.mrf.mxu0
      %1772 = vmatprep.mubr.f32.mxu0 0.0
      %1773 = vmatmul.mubr.f32.gmra.mxu0 %v1679
      %v1774 = vpop.f32.mrf.mxu0
      %v1775 = vadd.f32 %v1647, %v1774
      %v1776 = vpop.f32.mrf.mxu0
      %1777 = vmatprep.mubr.f32.mxu0 0.0
      %1778 = vmatmul.mubr.f32.gmra.mxu0 %v1682
      %v1779 = vpop.f32.mrf.mxu0
      %v1780 = vadd.f32 %v1652, %v1779
      %v1781 = vpop.f32.mrf.mxu0
      %1782 = vmatprep.mubr.f32.mxu0 0.0
      %1783 = vmatmul.mubr.f32.gmra.mxu0 %v1685
      %v1784 = vpop.f32.mrf.mxu0
      %v1785 = vadd.f32 %v1657, %v1784
      %v1786 = vpop.f32.mrf.mxu0
      %1787 = vmatprep.mubr.f32.mxu0 0.0
      %1788 = vmatmul.mubr.f32.gmra.mxu0 %v1688
      %v1789 = vpop.f32.mrf.mxu0
      %v1790 = vadd.f32 %v1662, %v1789
      %v1791 = vpop.f32.mrf.mxu0
      %1792 = vmatprep.mubr.f32.mxu0 0.0
      %1793 = vmatmul.mubr.f32.gmra.mxu0 %v1691
      %v1794 = vpop.f32.mrf.mxu0
      %v1795 = vadd.f32 %v1667, %v1794
      %v1796 = vpop.f32.mrf.mxu0
      %1797 = vdwg.mxu0
      %v1798 = vmax.f32 %v1760, 0.0
      %v1799 = vmax.f32 %v1765, 0.0
      %v1800 = vmax.f32 %v1770, 0.0
      %v1801 = vmax.f32 %v1775, 0.0
      %v1802 = vmax.f32 %v1780, 0.0
      %v1803 = vmax.f32 %v1785, 0.0
      %v1804 = vmax.f32 %v1790, 0.0
      %v1805 = vmax.f32 %v1795, 0.0
      %v1806 = vld [vmem:[%s17] sm:$0xff]
      %v1807 = vld [vmem:[%s17 + $0x8] sm:$0xff]
      %v1808 = vld [vmem:[%s17 + $0x10] sm:$0xff]
      %v1809 = vld [vmem:[%s17 + $0x18] sm:$0xff]
      %v1810 = vld [vmem:[%s17 + $0x20] sm:$0xff]
      %v1811 = vld [vmem:[%s17 + $0x28] sm:$0xff]
      %v1812 = vld [vmem:[%s17 + $0x30] sm:$0xff]
      %v1813 = vld [vmem:[%s17 + $0x38] sm:$0xff]
      %v1814 = vld [vmem:[%s17 + $0x40] sm:$0xff]
      %v1815 = vld [vmem:[%s17 + $0x48] sm:$0xff]
      %v1816 = vld [vmem:[%s17 + $0x50] sm:$0xff]
      %v1817 = vld [vmem:[%s17 + $0x58] sm:$0xff]
      %v1818 = vld [vmem:[%s17 + $0x60] sm:$0xff]
      %v1819 = vld [vmem:[%s17 + $0x68] sm:$0xff]
      %v1820 = vld [vmem:[%s17 + $0x70] sm:$0xff]
      %v1821 = vld [vmem:[%s17 + $0x78] sm:$0xff]
      %v1822 = vld [vmem:[%s18] sm:$0xff]
      %v1823 = vld [vmem:[%s18 + $0x8] sm:$0xff]
      %v1824 = vld [vmem:[%s18 + $0x10] sm:$0xff]
      %v1825 = vld [vmem:[%s18 + $0x18] sm:$0xff]
      %v1826 = vld [vmem:[%s18 + $0x20] sm:$0xff]
      %v1827 = vld [vmem:[%s18 + $0x28] sm:$0xff]
      %v1828 = vld [vmem:[%s18 + $0x30] sm:$0xff]
      %v1829 = vld [vmem:[%s18 + $0x38] sm:$0xff]
      %v1830 = vld [vmem:[%s18 + $0x40] sm:$0xff]
      %v1831 = vld [vmem:[%s18 + $0x48] sm:$0xff]
      %v1832 = vld [vmem:[%s18 + $0x50] sm:$0xff]
      %v1833 = vld [vmem:[%s18 + $0x58] sm:$0xff]
      %v1834 = vld [vmem:[%s18 + $0x60] sm:$0xff]
      %v1835 = vld [vmem:[%s18 + $0x68] sm:$0xff]
      %v1836 = vld [vmem:[%s18 + $0x70] sm:$0xff]
      %v1837 = vld [vmem:[%s18 + $0x78] sm:$0xff]
      %1839 = vset.pattern.permute.xlu0 0
      %1840 = vperm.xlu0 %1839, %v1822
      %v1841 = vpop.permute.xlu0 %1840
      %1844 = vset.pattern.permute.xlu0 0
      %1845 = vperm.xlu0 %1844, %v1823
      %v1846 = vpop.permute.xlu0 %1845
      %1849 = vset.pattern.permute.xlu0 0
      %1850 = vperm.xlu0 %1849, %v1824
      %v1851 = vpop.permute.xlu0 %1850
      %1854 = vset.pattern.permute.xlu0 0
      %1855 = vperm.xlu0 %1854, %v1825
      %v1856 = vpop.permute.xlu0 %1855
      %1859 = vset.pattern.permute.xlu0 0
      %1860 = vperm.xlu0 %1859, %v1826
      %v1861 = vpop.permute.xlu0 %1860
      %1864 = vset.pattern.permute.xlu0 0
      %1865 = vperm.xlu0 %1864, %v1827
      %v1866 = vpop.permute.xlu0 %1865
      %1869 = vset.pattern.permute.xlu0 0
      %1870 = vperm.xlu0 %1869, %v1828
      %v1871 = vpop.permute.xlu0 %1870
      %1874 = vset.pattern.permute.xlu0 0
      %1875 = vperm.xlu0 %1874, %v1829
      %v1876 = vpop.permute.xlu0 %1875
      %1879 = vset.pattern.permute.xlu0 0
      %1880 = vperm.xlu0 %1879, %v1830
      %v1881 = vpop.permute.xlu0 %1880
      %1884 = vset.pattern.permute.xlu0 0
      %1885 = vperm.xlu0 %1884, %v1831
      %v1886 = vpop.permute.xlu0 %1885
      %1889 = vset.pattern.permute.xlu0 0
      %1890 = vperm.xlu0 %1889, %v1832
      %v1891 = vpop.permute.xlu0 %1890
      %1894 = vset.pattern.permute.xlu0 0
      %1895 = vperm.xlu0 %1894, %v1833
      %v1896 = vpop.permute.xlu0 %1895
      %1899 = vset.pattern.permute.xlu0 0
      %1900 = vperm.xlu0 %1899, %v1834
      %v1901 = vpop.permute.xlu0 %1900
      %1904 = vset.pattern.permute.xlu0 0
      %1905 = vperm.xlu0 %1904, %v1835
      %v1906 = vpop.permute.xlu0 %1905
      %1909 = vset.pattern.permute.xlu0 0
      %1910 = vperm.xlu0 %1909, %v1836
      %v1911 = vpop.permute.xlu0 %1910
      %1914 = vset.pattern.permute.xlu0 0
      %1915 = vperm.xlu0 %1914, %v1837
      %v1916 = vpop.permute.xlu0 %1915
      %v1919 = vsel %vm1350, %v1806, 0
      %v1922 = vsel %vm1350, %v1807, 0
      %v1925 = vsel %vm1350, %v1808, 0
      %v1928 = vsel %vm1350, %v1809, 0
      %v1931 = vsel %vm1350, %v1810, 0
      %v1934 = vsel %vm1350, %v1811, 0
      %v1937 = vsel %vm1350, %v1812, 0
      %v1940 = vsel %vm1350, %v1813, 0
      %v1943 = vsel %vm1350, %v1814, 0
      %v1946 = vsel %vm1350, %v1815, 0
      %v1949 = vsel %vm1350, %v1816, 0
      %v1952 = vsel %vm1350, %v1817, 0
      %v1955 = vsel %vm1350, %v1818, 0
      %v1958 = vsel %vm1350, %v1819, 0
      %v1961 = vsel %vm1350, %v1820, 0
      %v1964 = vsel %vm1350, %v1821, 0
      %1966 = vmatprep.subr.mxu0 0.0
      %1967 = vmatpush1.msra.mxu0 0.0
      %1968 = vmatprep.subr.mxu0 0.0
      %1969 = vmatpush1.msra.mxu0 0.0
      %1970 = vmatprep.subr.mxu0 0.0
      %1971 = vmatpush1.msra.mxu0 0.0
      %1972 = vmatprep.subr.mxu0 0.0
      %1973 = vmatpush1.msra.mxu0 0.0
      %1974 = vmatprep.subr.mxu0 0.0
      %1975 = vmatpush1.msra.mxu0 0.0
      %1976 = vmatprep.subr.mxu0 0.0
      %1977 = vmatpush1.msra.mxu0 0.0
      %1978 = vmatprep.subr.mxu0 0.0
      %1979 = vmatpush1.msra.mxu0 0.0
      %1980 = vmatprep.subr.mxu0 0.0
      %1981 = vmatpush1.msra.mxu0 0.0
      %1982 = vmatprep.subr.mxu0 0.0
      %1983 = vmatpush1.msra.mxu0 %v1805
      %1984 = vmatprep.subr.mxu0 0.0
      %1985 = vmatpush1.msra.mxu0 %v1804
      %1986 = vmatprep.subr.mxu0 0.0
      %1987 = vmatpush1.msra.mxu0 %v1803
      %1988 = vmatprep.subr.mxu0 0.0
      %1989 = vmatpush1.msra.mxu0 %v1802
      %1990 = vmatprep.subr.mxu0 0.0
      %1991 = vmatpush1.msra.mxu0 %v1801
      %1992 = vmatprep.subr.mxu0 0.0
      %1993 = vmatpush1.msra.mxu0 %v1800
      %1994 = vmatprep.subr.mxu0 0.0
      %1995 = vmatpush1.msra.mxu0 %v1799
      %1996 = vmatprep.subr.mxu0 0.0
      %1997 = vmatpush1.msra.mxu0 %v1798
      %1998 = vmatprep.subr.mxu0 0.0
      %1999 = vmatpush2.msra.mxu0 0.0
      %2000 = vmatprep.subr.mxu0 0.0
      %2001 = vmatpush2.msra.mxu0 0.0
      %2002 = vmatprep.subr.mxu0 0.0
      %2003 = vmatpush2.msra.mxu0 0.0
      %2004 = vmatprep.subr.mxu0 0.0
      %2005 = vmatpush2.msra.mxu0 0.0
      %2006 = vmatprep.subr.mxu0 0.0
      %2007 = vmatpush2.msra.mxu0 0.0
      %2008 = vmatprep.subr.mxu0 0.0
      %2009 = vmatpush2.msra.mxu0 0.0
      %2010 = vmatprep.subr.mxu0 0.0
      %2011 = vmatpush2.msra.mxu0 0.0
      %2012 = vmatprep.subr.mxu0 0.0
      %2013 = vmatpush2.msra.mxu0 0.0
      %2014 = vmatprep.subr.mxu0 0.0
      %2015 = vmatpush2.msra.mxu0 0.0
      %2016 = vmatprep.subr.mxu0 0.0
      %2017 = vmatpush2.msra.mxu0 0.0
      %2018 = vmatprep.subr.mxu0 0.0
      %2019 = vmatpush2.msra.mxu0 0.0
      %2020 = vmatprep.subr.mxu0 0.0
      %2021 = vmatpush2.msra.mxu0 0.0
      %2022 = vmatprep.subr.mxu0 0.0
      %2023 = vmatpush2.msra.mxu0 0.0
      %2024 = vmatprep.subr.mxu0 0.0
      %2025 = vmatpush2.msra.mxu0 0.0
      %2026 = vmatprep.subr.mxu0 0.0
      %2027 = vmatpush2.msra.mxu0 0.0
      %2028 = vmatprep.subr.mxu0 0.0
      %2029 = vmatpush2.msra.mxu0 0.0
      %2030 = vmatprep.mubr.f32.mxu0 0.0
      %2031 = vmatmul.mubr.f32.gmra.mxu0 %v1919
      %v2032 = vpop.f32.mrf.mxu0
      %v2033 = vadd.f32 %v1841, %v2032
      %v2034 = vpop.f32.mrf.mxu0
      %2035 = vmatprep.mubr.f32.mxu0 0.0
      %2036 = vmatmul.mubr.f32.gmra.mxu0 %v1922
      %v2037 = vpop.f32.mrf.mxu0
      %v2038 = vadd.f32 %v1846, %v2037
      %v2039 = vpop.f32.mrf.mxu0
      %2040 = vmatprep.mubr.f32.mxu0 0.0
      %2041 = vmatmul.mubr.f32.gmra.mxu0 %v1925
      %v2042 = vpop.f32.mrf.mxu0
      %v2043 = vadd.f32 %v1851, %v2042
      %v2044 = vpop.f32.mrf.mxu0
      %2045 = vmatprep.mubr.f32.mxu0 0.0
      %2046 = vmatmul.mubr.f32.gmra.mxu0 %v1928
      %v2047 = vpop.f32.mrf.mxu0
      %v2048 = vadd.f32 %v1856, %v2047
      %v2049 = vpop.f32.mrf.mxu0
      %2050 = vmatprep.mubr.f32.mxu0 0.0
      %2051 = vmatmul.mubr.f32.gmra.mxu0 %v1931
      %v2052 = vpop.f32.mrf.mxu0
      %v2053 = vadd.f32 %v1861, %v2052
      %v2054 = vpop.f32.mrf.mxu0
      %2055 = vmatprep.mubr.f32.mxu0 0.0
      %2056 = vmatmul.mubr.f32.gmra.mxu0 %v1934
      %v2057 = vpop.f32.mrf.mxu0
      %v2058 = vadd.f32 %v1866, %v2057
      %v2059 = vpop.f32.mrf.mxu0
      %2060 = vmatprep.mubr.f32.mxu0 0.0
      %2061 = vmatmul.mubr.f32.gmra.mxu0 %v1937
      %v2062 = vpop.f32.mrf.mxu0
      %v2063 = vadd.f32 %v1871, %v2062
      %v2064 = vpop.f32.mrf.mxu0
      %2065 = vmatprep.mubr.f32.mxu0 0.0
      %2066 = vmatmul.mubr.f32.gmra.mxu0 %v1940
      %v2067 = vpop.f32.mrf.mxu0
      %v2068 = vadd.f32 %v1876, %v2067
      %v2069 = vpop.f32.mrf.mxu0
      %2070 = vmatprep.mubr.f32.mxu0 0.0
      %2071 = vmatmul.mubr.f32.gmra.mxu0 %v1943
      %v2072 = vpop.f32.mrf.mxu0
      %v2073 = vadd.f32 %v1881, %v2072
      %v2074 = vpop.f32.mrf.mxu0
      %2075 = vmatprep.mubr.f32.mxu0 0.0
      %2076 = vmatmul.mubr.f32.gmra.mxu0 %v1946
      %v2077 = vpop.f32.mrf.mxu0
      %v2078 = vadd.f32 %v1886, %v2077
      %v2079 = vpop.f32.mrf.mxu0
      %2080 = vmatprep.mubr.f32.mxu0 0.0
      %2081 = vmatmul.mubr.f32.gmra.mxu0 %v1949
      %v2082 = vpop.f32.mrf.mxu0
      %v2083 = vadd.f32 %v1891, %v2082
      %v2084 = vpop.f32.mrf.mxu0
      %2085 = vmatprep.mubr.f32.mxu0 0.0
      %2086 = vmatmul.mubr.f32.gmra.mxu0 %v1952
      %v2087 = vpop.f32.mrf.mxu0
      %v2088 = vadd.f32 %v1896, %v2087
      %v2089 = vpop.f32.mrf.mxu0
      %2090 = vmatprep.mubr.f32.mxu0 0.0
      %2091 = vmatmul.mubr.f32.gmra.mxu0 %v1955
      %v2092 = vpop.f32.mrf.mxu0
      %v2093 = vadd.f32 %v1901, %v2092
      %v2094 = vpop.f32.mrf.mxu0
      %2095 = vmatprep.mubr.f32.mxu0 0.0
      %2096 = vmatmul.mubr.f32.gmra.mxu0 %v1958
      %v2097 = vpop.f32.mrf.mxu0
      %v2098 = vadd.f32 %v1906, %v2097
      %v2099 = vpop.f32.mrf.mxu0
      %2100 = vmatprep.mubr.f32.mxu0 0.0
      %2101 = vmatmul.mubr.f32.gmra.mxu0 %v1961
      %v2102 = vpop.f32.mrf.mxu0
      %v2103 = vadd.f32 %v1911, %v2102
      %v2104 = vpop.f32.mrf.mxu0
      %2105 = vmatprep.mubr.f32.mxu0 0.0
      %2106 = vmatmul.mubr.f32.gmra.mxu0 %v1964
      %v2107 = vpop.f32.mrf.mxu0
      %v2108 = vadd.f32 %v1916, %v2107
      %v2109 = vpop.f32.mrf.mxu0
      %2110 = vdwg.mxu0
      %v2111 = vld [vmem:[#allocation2] sm:$0xff]
      %v2113 = vsel %vm1084, %v2111, 0
      %2115 = vmatprep.subr.mxu0 0.0
      %2116 = vmatpush1.msra.mxu0 0.0
      %2117 = vmatprep.subr.mxu0 0.0
      %2118 = vmatpush1.msra.mxu0 0.0
      %2119 = vmatprep.subr.mxu0 0.0
      %2120 = vmatpush1.msra.mxu0 0.0
      %2121 = vmatprep.subr.mxu0 0.0
      %2122 = vmatpush1.msra.mxu0 0.0
      %2123 = vmatprep.subr.mxu0 0.0
      %2124 = vmatpush1.msra.mxu0 0.0
      %2125 = vmatprep.subr.mxu0 0.0
      %2126 = vmatpush1.msra.mxu0 0.0
      %2127 = vmatprep.subr.mxu0 0.0
      %2128 = vmatpush1.msra.mxu0 0.0
      %2129 = vmatprep.subr.mxu0 0.0
      %2130 = vmatpush1.msra.mxu0 0.0
      %2131 = vmatprep.subr.mxu0 0.0
      %2132 = vmatpush1.msra.mxu0 0.0
      %2133 = vmatprep.subr.mxu0 0.0
      %2134 = vmatpush1.msra.mxu0 0.0
      %2135 = vmatprep.subr.mxu0 0.0
      %2136 = vmatpush1.msra.mxu0 0.0
      %2137 = vmatprep.subr.mxu0 0.0
      %2138 = vmatpush1.msra.mxu0 0.0
      %2139 = vmatprep.subr.mxu0 0.0
      %2140 = vmatpush1.msra.mxu0 %v1610
      %2141 = vmatprep.subr.mxu0 0.0
      %2142 = vmatpush1.msra.mxu0 %v1605
      %2143 = vmatprep.subr.mxu0 0.0
      %2144 = vmatpush1.msra.mxu0 %v1600
      %2145 = vmatprep.subr.mxu0 0.0
      %2146 = vmatpush1.msra.mxu0 %v1595
      %2147 = vmatprep.subr.mxu0 0.0
      %2148 = vmatpush2.msra.mxu0 0.0
      %2149 = vmatprep.subr.mxu0 0.0
      %2150 = vmatpush2.msra.mxu0 0.0
      %2151 = vmatprep.subr.mxu0 0.0
      %2152 = vmatpush2.msra.mxu0 0.0
      %2153 = vmatprep.subr.mxu0 0.0
      %2154 = vmatpush2.msra.mxu0 0.0
      %2155 = vmatprep.subr.mxu0 0.0
      %2156 = vmatpush2.msra.mxu0 0.0
      %2157 = vmatprep.subr.mxu0 0.0
      %2158 = vmatpush2.msra.mxu0 0.0
      %2159 = vmatprep.subr.mxu0 0.0
      %2160 = vmatpush2.msra.mxu0 0.0
      %2161 = vmatprep.subr.mxu0 0.0
      %2162 = vmatpush2.msra.mxu0 0.0
      %2163 = vmatprep.subr.mxu0 0.0
      %2164 = vmatpush2.msra.mxu0 0.0
      %2165 = vmatprep.subr.mxu0 0.0
      %2166 = vmatpush2.msra.mxu0 0.0
      %2167 = vmatprep.subr.mxu0 0.0
      %2168 = vmatpush2.msra.mxu0 0.0
      %2169 = vmatprep.subr.mxu0 0.0
      %2170 = vmatpush2.msra.mxu0 0.0
      %2171 = vmatprep.subr.mxu0 0.0
      %2172 = vmatpush2.msra.mxu0 0.0
      %2173 = vmatprep.subr.mxu0 0.0
      %2174 = vmatpush2.msra.mxu0 0.0
      %2175 = vmatprep.subr.mxu0 0.0
      %2176 = vmatpush2.msra.mxu0 0.0
      %2177 = vmatprep.subr.mxu0 0.0
      %2178 = vmatpush2.msra.mxu0 0.0
      %2179 = vmatprep.mubr.f32.mxu0 0.0
      %2180 = vmatmul.mubr.f32.gmra.mxu0 %v2113
      %v2181 = vpop.f32.mrf.mxu0
      %v2182 = vadd.f32 0.0, %v2181
      %v2183 = vpop.f32.mrf.mxu0
      %2184 = vdwg.mxu0
      %2185 = vst.msk [vmem:[%s689] sm:$0xff] %vm1350, %v2182
      %s2186 = sld [smem:[#allocation3]]
      %v2187 = vstv %s2186
      %2188 = vmatprep.subr.mxu0 0.0
      %2189 = vmatpush1.msra.mxu0 0.0
      %2190 = vmatprep.subr.mxu0 0.0
      %2191 = vmatpush1.msra.mxu0 0.0
      %2192 = vmatprep.subr.mxu0 0.0
      %2193 = vmatpush1.msra.mxu0 0.0
      %2194 = vmatprep.subr.mxu0 0.0
      %2195 = vmatpush1.msra.mxu0 0.0
      %2196 = vmatprep.subr.mxu0 0.0
      %2197 = vmatpush1.msra.mxu0 0.0
      %2198 = vmatprep.subr.mxu0 0.0
      %2199 = vmatpush1.msra.mxu0 0.0
      %2200 = vmatprep.subr.mxu0 0.0
      %2201 = vmatpush1.msra.mxu0 0.0
      %2202 = vmatprep.subr.mxu0 0.0
      %2203 = vmatpush1.msra.mxu0 0.0
      %2204 = vmatprep.subr.mxu0 0.0
      %2205 = vmatpush1.msra.mxu0 0.0
      %2206 = vmatprep.subr.mxu0 0.0
      %2207 = vmatpush1.msra.mxu0 0.0
      %2208 = vmatprep.subr.mxu0 0.0
      %2209 = vmatpush1.msra.mxu0 0.0
      %2210 = vmatprep.subr.mxu0 0.0
      %2211 = vmatpush1.msra.mxu0 0.0
      %2212 = vmatprep.subr.mxu0 0.0
      %2213 = vmatpush1.msra.mxu0 %v2048
      %2214 = vmatprep.subr.mxu0 0.0
      %2215 = vmatpush1.msra.mxu0 %v2043
      %2216 = vmatprep.subr.mxu0 0.0
      %2217 = vmatpush1.msra.mxu0 %v2038
      %2218 = vmatprep.subr.mxu0 0.0
      %2219 = vmatpush1.msra.mxu0 %v2033
      %2220 = vmatprep.subr.mxu0 0.0
      %2221 = vmatpush2.msra.mxu0 0.0
      %2222 = vmatprep.subr.mxu0 0.0
      %2223 = vmatpush2.msra.mxu0 0.0
      %2224 = vmatprep.subr.mxu0 0.0
      %2225 = vmatpush2.msra.mxu0 0.0
      %2226 = vmatprep.subr.mxu0 0.0
      %2227 = vmatpush2.msra.mxu0 0.0
      %2228 = vmatprep.subr.mxu0 0.0
      %2229 = vmatpush2.msra.mxu0 0.0
      %2230 = vmatprep.subr.mxu0 0.0
      %2231 = vmatpush2.msra.mxu0 0.0
      %2232 = vmatprep.subr.mxu0 0.0
      %2233 = vmatpush2.msra.mxu0 0.0
      %2234 = vmatprep.subr.mxu0 0.0
      %2235 = vmatpush2.msra.mxu0 0.0
      %2236 = vmatprep.subr.mxu0 0.0
      %2237 = vmatpush2.msra.mxu0 0.0
      %2238 = vmatprep.subr.mxu0 0.0
      %2239 = vmatpush2.msra.mxu0 0.0
      %2240 = vmatprep.subr.mxu0 0.0
      %2241 = vmatpush2.msra.mxu0 0.0
      %2242 = vmatprep.subr.mxu0 0.0
      %2243 = vmatpush2.msra.mxu0 0.0
      %2244 = vmatprep.subr.mxu0 0.0
      %2245 = vmatpush2.msra.mxu0 0.0
      %2246 = vmatprep.subr.mxu0 0.0
      %2247 = vmatpush2.msra.mxu0 0.0
      %2248 = vmatprep.subr.mxu0 0.0
      %2249 = vmatpush2.msra.mxu0 0.0
      %2250 = vmatprep.subr.mxu0 0.0
      %2251 = vmatpush2.msra.mxu0 0.0
      %2252 = vmatprep.mubr.f32.mxu0 0.0
      %2253 = vmatmul.mubr.f32.gmra.mxu0 %v2113
      %v2254 = vpop.f32.mrf.mxu0
      %v2255 = vadd.f32 %v2187, %v2254
      %v2256 = vpop.f32.mrf.mxu0
      %2257 = vdwg.mxu0
      %2258 = vst.msk [vmem:[%s697] sm:$0xff] %vm1350, %v2255
      %2259 = vmatprep.subr.mxu0 0.0
      %2260 = vmatpush1.msra.mxu0 0.0
      %2261 = vmatprep.subr.mxu0 0.0
      %2262 = vmatpush1.msra.mxu0 0.0
      %2263 = vmatprep.subr.mxu0 0.0
      %2264 = vmatpush1.msra.mxu0 0.0
      %2265 = vmatprep.subr.mxu0 0.0
      %2266 = vmatpush1.msra.mxu0 0.0
      %2267 = vmatprep.subr.mxu0 0.0
      %2268 = vmatpush1.msra.mxu0 0.0
      %2269 = vmatprep.subr.mxu0 0.0
      %2270 = vmatpush1.msra.mxu0 0.0
      %2271 = vmatprep.subr.mxu0 0.0
      %2272 = vmatpush1.msra.mxu0 0.0
      %2273 = vmatprep.subr.mxu0 0.0
      %2274 = vmatpush1.msra.mxu0 0.0
      %2275 = vmatprep.subr.mxu0 0.0
      %2276 = vmatpush1.msra.mxu0 0.0
      %2277 = vmatprep.subr.mxu0 0.0
      %2278 = vmatpush1.msra.mxu0 0.0
      %2279 = vmatprep.subr.mxu0 0.0
      %2280 = vmatpush1.msra.mxu0 0.0
      %2281 = vmatprep.subr.mxu0 0.0
      %2282 = vmatpush1.msra.mxu0 0.0
      %2283 = vmatprep.subr.mxu0 0.0
      %2284 = vmatpush1.msra.mxu0 %v2068
      %2285 = vmatprep.subr.mxu0 0.0
      %2286 = vmatpush1.msra.mxu0 %v2063
      %2287 = vmatprep.subr.mxu0 0.0
      %2288 = vmatpush1.msra.mxu0 %v2058
      %2289 = vmatprep.subr.mxu0 0.0
      %2290 = vmatpush1.msra.mxu0 %v2053
      %2291 = vmatprep.subr.mxu0 0.0
      %2292 = vmatpush2.msra.mxu0 0.0
      %2293 = vmatprep.subr.mxu0 0.0
      %2294 = vmatpush2.msra.mxu0 0.0
      %2295 = vmatprep.subr.mxu0 0.0
      %2296 = vmatpush2.msra.mxu0 0.0
      %2297 = vmatprep.subr.mxu0 0.0
      %2298 = vmatpush2.msra.mxu0 0.0
      %2299 = vmatprep.subr.mxu0 0.0
      %2300 = vmatpush2.msra.mxu0 0.0
      %2301 = vmatprep.subr.mxu0 0.0
      %2302 = vmatpush2.msra.mxu0 0.0
      %2303 = vmatprep.subr.mxu0 0.0
      %2304 = vmatpush2.msra.mxu0 0.0
      %2305 = vmatprep.subr.mxu0 0.0
      %2306 = vmatpush2.msra.mxu0 0.0
      %2307 = vmatprep.subr.mxu0 0.0
      %2308 = vmatpush2.msra.mxu0 0.0
      %2309 = vmatprep.subr.mxu0 0.0
      %2310 = vmatpush2.msra.mxu0 0.0
      %2311 = vmatprep.subr.mxu0 0.0
      %2312 = vmatpush2.msra.mxu0 0.0
      %2313 = vmatprep.subr.mxu0 0.0
      %2314 = vmatpush2.msra.mxu0 0.0
      %2315 = vmatprep.subr.mxu0 0.0
      %2316 = vmatpush2.msra.mxu0 0.0
      %2317 = vmatprep.subr.mxu0 0.0
      %2318 = vmatpush2.msra.mxu0 0.0
      %2319 = vmatprep.subr.mxu0 0.0
      %2320 = vmatpush2.msra.mxu0 0.0
      %2321 = vmatprep.subr.mxu0 0.0
      %2322 = vmatpush2.msra.mxu0 0.0
      %2323 = vmatprep.mubr.f32.mxu0 0.0
      %2324 = vmatmul.mubr.f32.gmra.mxu0 %v2113
      %v2325 = vpop.f32.mrf.mxu0
      %v2326 = vadd.f32 %v2187, %v2325
      %v2327 = vpop.f32.mrf.mxu0
      %2328 = vdwg.mxu0
      %s2329 = scalar_lea.vmem %s697, 8
      %2330 = vst.msk [vmem:[%s2329] sm:$0xff] %vm1350, %v2326
      %2331 = vmatprep.subr.mxu0 0.0
      %2332 = vmatpush1.msra.mxu0 0.0
      %2333 = vmatprep.subr.mxu0 0.0
      %2334 = vmatpush1.msra.mxu0 0.0
      %2335 = vmatprep.subr.mxu0 0.0
      %2336 = vmatpush1.msra.mxu0 0.0
      %2337 = vmatprep.subr.mxu0 0.0
      %2338 = vmatpush1.msra.mxu0 0.0
      %2339 = vmatprep.subr.mxu0 0.0
      %2340 = vmatpush1.msra.mxu0 0.0
      %2341 = vmatprep.subr.mxu0 0.0
      %2342 = vmatpush1.msra.mxu0 0.0
      %2343 = vmatprep.subr.mxu0 0.0
      %2344 = vmatpush1.msra.mxu0 0.0
      %2345 = vmatprep.subr.mxu0 0.0
      %2346 = vmatpush1.msra.mxu0 0.0
      %2347 = vmatprep.subr.mxu0 0.0
      %2348 = vmatpush1.msra.mxu0 0.0
      %2349 = vmatprep.subr.mxu0 0.0
      %2350 = vmatpush1.msra.mxu0 0.0
      %2351 = vmatprep.subr.mxu0 0.0
      %2352 = vmatpush1.msra.mxu0 0.0
      %2353 = vmatprep.subr.mxu0 0.0
      %2354 = vmatpush1.msra.mxu0 0.0
      %2355 = vmatprep.subr.mxu0 0.0
      %2356 = vmatpush1.msra.mxu0 %v2088
      %2357 = vmatprep.subr.mxu0 0.0
      %2358 = vmatpush1.msra.mxu0 %v2083
      %2359 = vmatprep.subr.mxu0 0.0
      %2360 = vmatpush1.msra.mxu0 %v2078
      %2361 = vmatprep.subr.mxu0 0.0
      %2362 = vmatpush1.msra.mxu0 %v2073
      %2363 = vmatprep.subr.mxu0 0.0
      %2364 = vmatpush2.msra.mxu0 0.0
      %2365 = vmatprep.subr.mxu0 0.0
      %2366 = vmatpush2.msra.mxu0 0.0
      %2367 = vmatprep.subr.mxu0 0.0
      %2368 = vmatpush2.msra.mxu0 0.0
      %2369 = vmatprep.subr.mxu0 0.0
      %2370 = vmatpush2.msra.mxu0 0.0
      %2371 = vmatprep.subr.mxu0 0.0
      %2372 = vmatpush2.msra.mxu0 0.0
      %2373 = vmatprep.subr.mxu0 0.0
      %2374 = vmatpush2.msra.mxu0 0.0
      %2375 = vmatprep.subr.mxu0 0.0
      %2376 = vmatpush2.msra.mxu0 0.0
      %2377 = vmatprep.subr.mxu0 0.0
      %2378 = vmatpush2.msra.mxu0 0.0
      %2379 = vmatprep.subr.mxu0 0.0
      %2380 = vmatpush2.msra.mxu0 0.0
      %2381 = vmatprep.subr.mxu0 0.0
      %2382 = vmatpush2.msra.mxu0 0.0
      %2383 = vmatprep.subr.mxu0 0.0
      %2384 = vmatpush2.msra.mxu0 0.0
      %2385 = vmatprep.subr.mxu0 0.0
      %2386 = vmatpush2.msra.mxu0 0.0
      %2387 = vmatprep.subr.mxu0 0.0
      %2388 = vmatpush2.msra.mxu0 0.0
      %2389 = vmatprep.subr.mxu0 0.0
      %2390 = vmatpush2.msra.mxu0 0.0
      %2391 = vmatprep.subr.mxu0 0.0
      %2392 = vmatpush2.msra.mxu0 0.0
      %2393 = vmatprep.subr.mxu0 0.0
      %2394 = vmatpush2.msra.mxu0 0.0
      %2395 = vmatprep.mubr.f32.mxu0 0.0
      %2396 = vmatmul.mubr.f32.gmra.mxu0 %v2113
      %v2397 = vpop.f32.mrf.mxu0
      %v2398 = vadd.f32 %v2187, %v2397
      %v2399 = vpop.f32.mrf.mxu0
      %2400 = vdwg.mxu0
      %s2401 = scalar_lea.vmem %s697, 16
      %2402 = vst.msk [vmem:[%s2401] sm:$0xff] %vm1350, %v2398
      %2403 = vmatprep.subr.mxu0 0.0
      %2404 = vmatpush1.msra.mxu0 0.0
      %2405 = vmatprep.subr.mxu0 0.0
      %2406 = vmatpush1.msra.mxu0 0.0
      %2407 = vmatprep.subr.mxu0 0.0
      %2408 = vmatpush1.msra.mxu0 0.0
      %2409 = vmatprep.subr.mxu0 0.0
      %2410 = vmatpush1.msra.mxu0 0.0
      %2411 = vmatprep.subr.mxu0 0.0
      %2412 = vmatpush1.msra.mxu0 0.0
      %2413 = vmatprep.subr.mxu0 0.0
      %2414 = vmatpush1.msra.mxu0 0.0
      %2415 = vmatprep.subr.mxu0 0.0
      %2416 = vmatpush1.msra.mxu0 0.0
      %2417 = vmatprep.subr.mxu0 0.0
      %2418 = vmatpush1.msra.mxu0 0.0
      %2419 = vmatprep.subr.mxu0 0.0
      %2420 = vmatpush1.msra.mxu0 0.0
      %2421 = vmatprep.subr.mxu0 0.0
      %2422 = vmatpush1.msra.mxu0 0.0
      %2423 = vmatprep.subr.mxu0 0.0
      %2424 = vmatpush1.msra.mxu0 0.0
      %2425 = vmatprep.subr.mxu0 0.0
      %2426 = vmatpush1.msra.mxu0 0.0
      %2427 = vmatprep.subr.mxu0 0.0
      %2428 = vmatpush1.msra.mxu0 %v2108
      %2429 = vmatprep.subr.mxu0 0.0
      %2430 = vmatpush1.msra.mxu0 %v2103
      %2431 = vmatprep.subr.mxu0 0.0
      %2432 = vmatpush1.msra.mxu0 %v2098
      %2433 = vmatprep.subr.mxu0 0.0
      %2434 = vmatpush1.msra.mxu0 %v2093
      %2435 = vmatprep.subr.mxu0 0.0
      %2436 = vmatpush2.msra.mxu0 0.0
      %2437 = vmatprep.subr.mxu0 0.0
      %2438 = vmatpush2.msra.mxu0 0.0
      %2439 = vmatprep.subr.mxu0 0.0
      %2440 = vmatpush2.msra.mxu0 0.0
      %2441 = vmatprep.subr.mxu0 0.0
      %2442 = vmatpush2.msra.mxu0 0.0
      %2443 = vmatprep.subr.mxu0 0.0
      %2444 = vmatpush2.msra.mxu0 0.0
      %2445 = vmatprep.subr.mxu0 0.0
      %2446 = vmatpush2.msra.mxu0 0.0
      %2447 = vmatprep.subr.mxu0 0.0
      %2448 = vmatpush2.msra.mxu0 0.0
      %2449 = vmatprep.subr.mxu0 0.0
      %2450 = vmatpush2.msra.mxu0 0.0
      %2451 = vmatprep.subr.mxu0 0.0
      %2452 = vmatpush2.msra.mxu0 0.0
      %2453 = vmatprep.subr.mxu0 0.0
      %2454 = vmatpush2.msra.mxu0 0.0
      %2455 = vmatprep.subr.mxu0 0.0
      %2456 = vmatpush2.msra.mxu0 0.0
      %2457 = vmatprep.subr.mxu0 0.0
      %2458 = vmatpush2.msra.mxu0 0.0
      %2459 = vmatprep.subr.mxu0 0.0
      %2460 = vmatpush2.msra.mxu0 0.0
      %2461 = vmatprep.subr.mxu0 0.0
      %2462 = vmatpush2.msra.mxu0 0.0
      %2463 = vmatprep.subr.mxu0 0.0
      %2464 = vmatpush2.msra.mxu0 0.0
      %2465 = vmatprep.subr.mxu0 0.0
      %2466 = vmatpush2.msra.mxu0 0.0
      %2467 = vmatprep.mubr.f32.mxu0 0.0
      %2468 = vmatmul.mubr.f32.gmra.mxu0 %v2113
      %v2469 = vpop.f32.mrf.mxu0
      %v2470 = vadd.f32 %v2187, %v2469
      %v2471 = vpop.f32.mrf.mxu0
      %2472 = vdwg.mxu0
      %s2473 = scalar_lea.vmem %s697, 24
      %2474 = vst.msk [vmem:[%s2473] sm:$0xff] %vm1350, %v2470
      %p2475 = scmp.lt.s32.totalorder %s37, 1
      %s2476 = scalar_select %p2475, %s37, 1
      %p2477 = scmp.lt.s32.totalorder %s38, 0
      %s2478 = scalar_select %p2477, %s38, 0
      %s2479 = sadd.s32 %s2478, %s2476
      %s2480 = smul.addr %s2479, 8
      %s2481 = scalar_lea.vmem %s19, %s2480
      %p2482 = scmp.lt.s32.totalorder %s37, 1
      %s2483 = scalar_select %p2482, %s37, 1
      %p2484 = scmp.lt.s32.totalorder %s38, 0
      %s2485 = scalar_select %p2484, %s38, 0
      %s2486 = smul.addr %s2483, 4
      %s2487 = sadd.s32 %s2485, %s2486
      %s2488 = smul.addr %s2487, 8
      %s2489 = scalar_lea.vmem %s20, %s2488
      // Predicated region
      $region101: #{mask_decoder_forward.1} parent=95 // pred_check
        %p2490 = pneg %p476
      $region102: #{mask_decoder_forward.1} parent=95 // pred_check_branch
        %2492 = sbr.rel (%p2490) target = $region104
      $region103: #{mask_decoder_forward.1} parent=95 // pred_region
        _
      $region104: #{mask_decoder_forward.1} parent=95 // pred_fallthru
        _
      // Predicated region
      $region105: #{mask_decoder_forward.1} parent=95 // pred_check
        %p2493 = pneg %p504
      $region106: #{mask_decoder_forward.1} parent=95 // pred_check_branch
        %2495 = sbr.rel (%p2493) target = $region108
      $region107: #{mask_decoder_forward.1} parent=95 // pred_region
        _
      $region108: #{mask_decoder_forward.1} parent=95 // pred_fallthru
        _
    $region96: #{mask_decoder_forward.1} parent=5 // pred_fallthru
      _
    %p2496 = scmp.le.s32.totalorder 2, %s28
    // Predicated region
    $region109: #{mask_decoder_forward.1} parent=5 // pred_check
      %p2497 = pneg %p2496
    $region110: #{mask_decoder_forward.1} parent=5 // pred_check_branch
      %2499 = sbr.rel (%p2497) target = $region112
    $region111: #{mask_decoder_forward.1} parent=5 // pred_region
      %s2500 = ssub.s32 %s28, 2
      // Predicated region
      $region113: #{mask_decoder_forward.1} parent=111 // pred_check
        %p2501 = pneg %p482
      $region114: #{mask_decoder_forward.1} parent=111 // pred_check_branch
        %2503 = sbr.rel (%p2501) target = $region116
      $region115: #{mask_decoder_forward.1} parent=111 // pred_region
        %p2504 = scmp.lt.s32.totalorder %s39, 1
        %s2505 = scalar_select %p2504, %s39, 1
        %p2506 = scmp.lt.s32.totalorder %s40, 0
        %s2507 = scalar_select %p2506, %s40, 0
        %s2508 = sadd.s32 %s2507, %s2505
        %s2509 = smul.addr %s2508, 8
        %s2510 = scalar_lea.vmem %s19, %s2509
      $region116: #{mask_decoder_forward.1} parent=111 // pred_fallthru
        _
      // Predicated region
      $region117: #{mask_decoder_forward.1} parent=111 // pred_check
        %p2511 = pneg %p510
      $region118: #{mask_decoder_forward.1} parent=111 // pred_check_branch
        %2513 = sbr.rel (%p2511) target = $region120
      $region119: #{mask_decoder_forward.1} parent=111 // pred_region
        %p2514 = scmp.lt.s32.totalorder %s39, 1
        %s2515 = scalar_select %p2514, %s39, 1
        %p2516 = scmp.lt.s32.totalorder %s40, 0
        %s2517 = scalar_select %p2516, %s40, 0
        %s2518 = smul.addr %s2515, 4
        %s2519 = sadd.s32 %s2517, %s2518
        %s2520 = smul.addr %s2519, 8
        %s2521 = scalar_lea.vmem %s20, %s2520
      $region120: #{mask_decoder_forward.1} parent=111 // pred_fallthru
        _
    $region112: #{mask_decoder_forward.1} parent=5 // pred_fallthru
      _
  $region6: #{mask_decoder_forward.1} parent=0 // loop_footer
    %s32 = sadd.s32 1, %s28
  $region7: #{mask_decoder_forward.1} parent=0 // loop_footer_branch
    %27 = sbr.rel target = $region3
  $region8: #{mask_decoder_forward.1} parent=0 // loop_exit
    _

</llo_original>
